<compile_context>
chip_gen: v6e
topology: v6e:2x2x1
jax: 0.10.0
libtpu: 0.0.40
codegen_flags: <defaults>
</compile_context>

<pallas_src>
import math
import functools

import jax
import jax.numpy as jnp
from jax.experimental import pallas as pl
from jax.experimental.pallas import tpu as pltpu


def _layernorm(x, gamma, beta, eps=1e-5):
    # x: (N, D) float32; gamma/beta: (1, D)
    mean = jnp.mean(x, axis=-1, keepdims=True)
    centered = x - mean
    var = jnp.mean(centered * centered, axis=-1, keepdims=True)
    inv = jax.lax.rsqrt(var + eps)
    return centered * inv * gamma + beta


def _block_kernel(v_ref, k_ref, q_ref,
                  wq_ref, bq_ref, wk_ref, bk_ref, wv_ref, bv_ref,
                  woh_ref, bo_ref,
                  g1_ref, be1_ref,
                  w1_ref, b1_ref, w2_ref, b2_ref,
                  g2_ref, be2_ref,
                  out_ref,
                  *, num_heads, d_head):
    Bt, S, D = q_ref.shape
    N = Bt * S

    xq = q_ref[...].reshape(N, D)
    xk = k_ref[...].reshape(N, D)
    xv = v_ref[...].reshape(N, D)
    act_dt = xq.dtype  # keep MXU operands in activation dtype (bf16-friendly)

    # --- QKV projections: full (D,D) matmuls, f32 accumulation -----------
    scale = 1.0 / math.sqrt(d_head)
    Q = (jnp.dot(xq, wq_ref[...], preferred_element_type=jnp.float32)
         + bq_ref[...]) * scale          # fold 1/sqrt(dh) into Q, not scores
    K = jnp.dot(xk, wk_ref[...], preferred_element_type=jnp.float32) + bk_ref[...]
    V = jnp.dot(xv, wv_ref[...], preferred_element_type=jnp.float32) + bv_ref[...]
    Qc = Q.astype(act_dt)
    Kc = K.astype(act_dt)
    Vc = V.astype(act_dt)

    # --- multi-head attention (mask=None path), batched over Bt ----------
    # Per-head output rows of Wo are pre-split in the wrapper, so the head
    # contexts are folded into the output projection by accumulation — no
    # concat / masked lane writes and no .T transposes.
    # Note: for long sequences (S >~ 512) this would become a KV-tiled
    # online-softmax (flash-style) loop with m/l/acc scratch accumulators.
    attn_out = jnp.zeros((N, D), jnp.float32)
    for h in range(num_heads):            # static loop over heads
        lo = h * d_head
        qh = Qc[:, lo:lo + d_head].reshape(Bt, S, d_head)
        kh = Kc[:, lo:lo + d_head].reshape(Bt, S, d_head)
        vh = Vc[:, lo:lo + d_head].reshape(Bt, S, d_head)
        s = jnp.einsum('bqd,bkd->bqk', qh, kh,
                       preferred_element_type=jnp.float32)        # (Bt,S,S)
        s = s - jnp.max(s, axis=-1, keepdims=True)
        p = jnp.exp(s)
        p = p * pl.reciprocal(jnp.sum(p, axis=-1, keepdims=True), approx=True)
        ctx = jnp.einsum('bqk,bkd->bqd', p.astype(act_dt), vh,
                         preferred_element_type=jnp.float32)      # (Bt,S,dh)
        attn_out = attn_out + jnp.dot(ctx.reshape(N, d_head), woh_ref[h],
                                      preferred_element_type=jnp.float32)
    attn_out = attn_out + bo_ref[...]

    # --- x = dropout(norm1(attention)); dropout = identity in eval -------
    x = _layernorm(attn_out, g1_ref[...], be1_ref[...])

    # --- feed forward: Linear -> ReLU -> Linear ---------------------------
    h1 = jnp.dot(x.astype(act_dt), w1_ref[...],
                 preferred_element_type=jnp.float32) + b1_ref[...]
    h1 = jnp.maximum(h1, 0.0)
    ff = jnp.dot(h1.astype(act_dt), w2_ref[...],
                 preferred_element_type=jnp.float32) + b2_ref[...]

    # --- out = dropout(norm2(forward + x)) --------------------------------
    out = _layernorm(ff + x, g2_ref[...], be2_ref[...])
    out_ref[...] = out.reshape(Bt, S, D).astype(out_ref.dtype)


def _choose_block_b(B, S, target_rows=256):
    # Fold as many batch elements per grid step as gives ~target_rows rows,
    # while evenly dividing B (amortizes ~0.35us per-step pipeline overhead).
    bb = max(1, min(B, max(1, target_rows // max(S, 1))))
    while B % bb:
        bb -= 1
    return bb


def transformer_block(value, key, query, params, *, num_heads, block_b=None):
    B, S, D = query.shape
    assert D % num_heads == 0, "d_model must be divisible by num_heads"
    d_head = D // num_heads
    H = params["w1"].shape[1]  # hidden = forward_scale * d_model
    if block_b is None:
        block_b = _choose_block_b(B, S)
    assert B % block_b == 0

    # Pre-split Wo by head rows (done once in the wrapper, free): (nh, dh, D).
    woh = params["wo"].reshape(num_heads, d_head, D)

    kernel = functools.partial(_block_kernel, num_heads=num_heads, d_head=d_head)

    act_spec = pl.BlockSpec((block_b, S, D), lambda b: (b, 0, 0))

    def full(shape):
        return pl.BlockSpec(shape, lambda b: (0,) * len(shape))

    in_specs = [
        act_spec, act_spec, act_spec,                    # value, key, query
        full((D, D)), full((1, D)),                      # wq, bq
        full((D, D)), full((1, D)),                      # wk, bk
        full((D, D)), full((1, D)),                      # wv, bv
        full((num_heads, d_head, D)), full((1, D)),      # wo (per-head), bo
        full((1, D)), full((1, D)),                      # ln1 gamma, beta
        full((D, H)), full((1, H)),                      # ff w1, b1
        full((H, D)), full((1, D)),                      # ff w2, b2
        full((1, D)), full((1, D)),                      # ln2 gamma, beta
    ]

    weights = (
        params["wq"], params["bq"], params["wk"], params["bk"],
        params["wv"], params["bv"], woh, params["bo"],
        params["ln1_g"], params["ln1_b"],
        params["w1"], params["b1"], params["w2"], params["b2"],
        params["ln2_g"], params["ln2_b"],
    )

    # Advisory cost estimate so XLA can schedule around the custom call.
    N = B * S
    flops = 2 * N * D * D * 4 + 4 * B * S * S * D + 4 * N * D * H
    transcendentals = B * num_heads * S * S + 2 * N
    bytes_accessed = 4 * N * D * query.dtype.itemsize + sum(
        int(w.size) * w.dtype.itemsize for w in weights)

    return pl.pallas_call(
        kernel,
        out_shape=jax.ShapeDtypeStruct((B, S, D), query.dtype),
        grid=(B // block_b,),
        in_specs=in_specs,
        out_specs=pl.BlockSpec((block_b, S, D), lambda b: (b, 0, 0)),
        compiler_params=pltpu.CompilerParams(
            dimension_semantics=("parallel",),
            vmem_limit_bytes=48 * 1024 * 1024),
        cost_estimate=pl.CostEstimate(
            flops=flops,
            transcendentals=transcendentals,
            bytes_accessed=bytes_accessed),
    )(value, key, query, *weights)


def transformer_block_ref(value, key, query, params, *, num_heads):
    """Pure-JAX reference (mirrors the PyTorch module in eval mode)."""
    B, S, D = query.shape
    dh = D // num_heads

    def linear(x, w, b):
        return jnp.einsum('bsd,df->bsf', x, w) + b

    Q = linear(query, params["wq"], params["bq"])
    K = linear(key, params["wk"], params["bk"])
    V = linear(value, params["wv"], params["bv"])
    Qh = Q.reshape(B, S, num_heads, dh).transpose(0, 2, 1, 3)
    Kh = K.reshape(B, S, num_heads, dh).transpose(0, 2, 1, 3)
    Vh = V.reshape(B, S, num_heads, dh).transpose(0, 2, 1, 3)
    s = jnp.einsum('bhqd,bhkd->bhqk', Qh, Kh) / math.sqrt(dh)
    p = jax.nn.softmax(s, axis=-1)
    ctx = jnp.einsum('bhqk,bhkd->bhqd', p, Vh)
    ctx = ctx.transpose(0, 2, 1, 3).reshape(B, S, D)
    attn = jnp.einsum('bsd,df->bsf', ctx, params["wo"]) + params["bo"]

    def ln(x, g, b, eps=1e-5):
        m = jnp.mean(x, axis=-1, keepdims=True)
        v = jnp.mean((x - m) ** 2, axis=-1, keepdims=True)
        return (x - m) / jnp.sqrt(v + eps) * g + b

    x = ln(attn, params["ln1_g"], params["ln1_b"])
    h1 = jnp.maximum(jnp.einsum('bsd,dh->bsh', x, params["w1"]) + params["b1"], 0.0)
    ff = jnp.einsum('bsh,hd->bsd', h1, params["w2"]) + params["b2"]
    return ln(ff + x, params["ln2_g"], params["ln2_b"])


def init_params(key, d_model, forward_scale):
    H = forward_scale * d_model
    ks = jax.random.split(key, 12)
    n = lambda k, s: (0.02 * jax.random.normal(k, s, dtype=jnp.float32))
    return {
        "wq": n(ks[0], (d_model, d_model)), "bq": n(ks[1], (1, d_model)),
        "wk": n(ks[2], (d_model, d_model)), "bk": n(ks[3], (1, d_model)),
        "wv": n(ks[4], (d_model, d_model)), "bv": n(ks[5], (1, d_model)),
        "wo": n(ks[6], (d_model, d_model)), "bo": n(ks[7], (1, d_model)),
        "ln1_g": jnp.ones((1, d_model), jnp.float32),
        "ln1_b": jnp.zeros((1, d_model), jnp.float32),
        "w1": n(ks[8], (d_model, H)), "b1": n(ks[9], (1, H)),
        "w2": n(ks[10], (H, d_model)), "b2": n(ks[11], (1, d_model)),
        "ln2_g": jnp.ones((1, d_model), jnp.float32),
        "ln2_b": jnp.zeros((1, d_model), jnp.float32),
    }


if __name__ == "__main__":
    B, S, D = 2, 8, 32
    num_heads = 4
    forward_scale = 4

    root = jax.random.PRNGKey(0)
    kp, kv, kk, kq = jax.random.split(root, 4)
    params = init_params(kp, D, forward_scale)

    value = jax.random.normal(kv, (B, S, D), dtype=jnp.float32)
    key_in = jax.random.normal(kk, (B, S, D), dtype=jnp.float32)
    query = jax.random.normal(kq, (B, S, D), dtype=jnp.float32)

    out = transformer_block(value, key_in, query, params, num_heads=num_heads)
    out = jax.block_until_ready(out)
    assert out.shape == (B, S, D)
    assert bool(jnp.all(jnp.isfinite(out)))

    ref = transformer_block_ref(value, key_in, query, params, num_heads=num_heads)
    assert bool(jnp.allclose(out, ref, rtol=2e-2, atol=2e-2)), \
        float(jnp.max(jnp.abs(out - ref)))
    print("KERNEL_OK")
</pallas_src>

<mosaic_0001>
module attributes {stable_mosaic.version = 11 : i64} {
  func.func @_block_kernel(%arg0: i32, %arg1: memref<2x8x32xf32, #tpu.memory_space<vmem>>, %arg2: memref<2x8x32xf32, #tpu.memory_space<vmem>>, %arg3: memref<2x8x32xf32, #tpu.memory_space<vmem>>, %arg4: memref<32x32xf32, #tpu.memory_space<vmem>>, %arg5: memref<1x32xf32, #tpu.memory_space<vmem>>, %arg6: memref<32x32xf32, #tpu.memory_space<vmem>>, %arg7: memref<1x32xf32, #tpu.memory_space<vmem>>, %arg8: memref<32x32xf32, #tpu.memory_space<vmem>>, %arg9: memref<1x32xf32, #tpu.memory_space<vmem>>, %arg10: memref<4x8x32xf32, #tpu.memory_space<vmem>>, %arg11: memref<1x32xf32, #tpu.memory_space<vmem>>, %arg12: memref<1x32xf32, #tpu.memory_space<vmem>>, %arg13: memref<1x32xf32, #tpu.memory_space<vmem>>, %arg14: memref<32x128xf32, #tpu.memory_space<vmem>>, %arg15: memref<1x128xf32, #tpu.memory_space<vmem>>, %arg16: memref<128x32xf32, #tpu.memory_space<vmem>>, %arg17: memref<1x32xf32, #tpu.memory_space<vmem>>, %arg18: memref<1x32xf32, #tpu.memory_space<vmem>>, %arg19: memref<1x32xf32, #tpu.memory_space<vmem>>, %arg20: memref<2x8x32xf32, #tpu.memory_space<vmem>>) attributes {dimension_semantics = [#tpu.dimension_semantics<parallel>], iteration_bounds = array<i64: 1>, scalar_prefetch = 0 : i64, scratch_operands = 0 : i64, tpu.core_type = #tpu.core_type<tc>, window_params = [{transform_indices = @transform_0, window_bounds = array<i64: 2, 8, 32>}, {transform_indices = @transform_1, window_bounds = array<i64: 2, 8, 32>}, {transform_indices = @transform_2, window_bounds = array<i64: 2, 8, 32>}, {pipeline_mode = #tpu.pipeline_mode<synchronous>, transform_indices = @transform_3, window_bounds = array<i64: 32, 32>}, {pipeline_mode = #tpu.pipeline_mode<synchronous>, transform_indices = @transform_4, window_bounds = array<i64: 1, 32>}, {pipeline_mode = #tpu.pipeline_mode<synchronous>, transform_indices = @transform_5, window_bounds = array<i64: 32, 32>}, {pipeline_mode = #tpu.pipeline_mode<synchronous>, transform_indices = @transform_6, window_bounds = array<i64: 1, 32>}, {pipeline_mode = #tpu.pipeline_mode<synchronous>, transform_indices = @transform_7, window_bounds = array<i64: 32, 32>}, {pipeline_mode = #tpu.pipeline_mode<synchronous>, transform_indices = @transform_8, window_bounds = array<i64: 1, 32>}, {pipeline_mode = #tpu.pipeline_mode<synchronous>, transform_indices = @transform_9, window_bounds = array<i64: 4, 8, 32>}, {pipeline_mode = #tpu.pipeline_mode<synchronous>, transform_indices = @transform_10, window_bounds = array<i64: 1, 32>}, {pipeline_mode = #tpu.pipeline_mode<synchronous>, transform_indices = @transform_11, window_bounds = array<i64: 1, 32>}, {pipeline_mode = #tpu.pipeline_mode<synchronous>, transform_indices = @transform_12, window_bounds = array<i64: 1, 32>}, {pipeline_mode = #tpu.pipeline_mode<synchronous>, transform_indices = @transform_13, window_bounds = array<i64: 32, 128>}, {pipeline_mode = #tpu.pipeline_mode<synchronous>, transform_indices = @transform_14, window_bounds = array<i64: 1, 128>}, {pipeline_mode = #tpu.pipeline_mode<synchronous>, transform_indices = @transform_15, window_bounds = array<i64: 128, 32>}, {pipeline_mode = #tpu.pipeline_mode<synchronous>, transform_indices = @transform_16, window_bounds = array<i64: 1, 32>}, {pipeline_mode = #tpu.pipeline_mode<synchronous>, transform_indices = @transform_17, window_bounds = array<i64: 1, 32>}, {pipeline_mode = #tpu.pipeline_mode<synchronous>, transform_indices = @transform_18, window_bounds = array<i64: 1, 32>}, {transform_indices = @transform_19, window_bounds = array<i64: 2, 8, 32>}]} {
    %c0 = arith.constant 0 : index
    %c0_0 = arith.constant 0 : index
    %c0_1 = arith.constant 0 : index
    %0 = vector.load %arg3[%c0, %c0_0, %c0_1] : memref<2x8x32xf32, #tpu.memory_space<vmem>>, vector<2x8x32xf32>
    %1 = vector.shape_cast %0 : vector<2x8x32xf32> to vector<16x32xf32>
    %c0_2 = arith.constant 0 : index
    %c0_3 = arith.constant 0 : index
    %c0_4 = arith.constant 0 : index
    %2 = vector.load %arg2[%c0_2, %c0_3, %c0_4] : memref<2x8x32xf32, #tpu.memory_space<vmem>>, vector<2x8x32xf32>
    %3 = vector.shape_cast %2 : vector<2x8x32xf32> to vector<16x32xf32>
    %c0_5 = arith.constant 0 : index
    %c0_6 = arith.constant 0 : index
    %c0_7 = arith.constant 0 : index
    %4 = vector.load %arg1[%c0_5, %c0_6, %c0_7] : memref<2x8x32xf32, #tpu.memory_space<vmem>>, vector<2x8x32xf32>
    %5 = vector.shape_cast %4 : vector<2x8x32xf32> to vector<16x32xf32>
    %c0_8 = arith.constant 0 : index
    %c0_9 = arith.constant 0 : index
    %6 = vector.load %arg4[%c0_8, %c0_9] : memref<32x32xf32, #tpu.memory_space<vmem>>, vector<32x32xf32>
    %cst = arith.constant dense<0.000000e+00> : vector<16x32xf32>
    %7 = tpu.matmul %1, %6, %cst {dimension_numbers = #tpu.dot_dimension_numbers<[1], [0], [0], [1], [0, 0, 1, 1], [], []>} : vector<16x32xf32>, vector<32x32xf32>, vector<16x32xf32> -> vector<16x32xf32>
    %c0_10 = arith.constant 0 : index
    %c0_11 = arith.constant 0 : index
    %8 = vector.load %arg5[%c0_10, %c0_11] : memref<1x32xf32, #tpu.memory_space<vmem>>, vector<1x32xf32>
    %9 = vector.broadcast %8 : vector<1x32xf32> to vector<16x32xf32>
    %10 = arith.addf %7, %9 : vector<16x32xf32>
    %cst_12 = arith.constant 0.353553385 : f32
    %11 = vector.broadcast %cst_12 : f32 to vector<16x32xf32>
    %12 = arith.mulf %10, %11 : vector<16x32xf32>
    %c0_13 = arith.constant 0 : index
    %c0_14 = arith.constant 0 : index
    %13 = vector.load %arg6[%c0_13, %c0_14] : memref<32x32xf32, #tpu.memory_space<vmem>>, vector<32x32xf32>
    %cst_15 = arith.constant dense<0.000000e+00> : vector<16x32xf32>
    %14 = tpu.matmul %3, %13, %cst_15 {dimension_numbers = #tpu.dot_dimension_numbers<[1], [0], [0], [1], [0, 0, 1, 1], [], []>} : vector<16x32xf32>, vector<32x32xf32>, vector<16x32xf32> -> vector<16x32xf32>
    %c0_16 = arith.constant 0 : index
    %c0_17 = arith.constant 0 : index
    %15 = vector.load %arg7[%c0_16, %c0_17] : memref<1x32xf32, #tpu.memory_space<vmem>>, vector<1x32xf32>
    %16 = vector.broadcast %15 : vector<1x32xf32> to vector<16x32xf32>
    %17 = arith.addf %14, %16 : vector<16x32xf32>
    %c0_18 = arith.constant 0 : index
    %c0_19 = arith.constant 0 : index
    %18 = vector.load %arg8[%c0_18, %c0_19] : memref<32x32xf32, #tpu.memory_space<vmem>>, vector<32x32xf32>
    %cst_20 = arith.constant dense<0.000000e+00> : vector<16x32xf32>
    %19 = tpu.matmul %5, %18, %cst_20 {dimension_numbers = #tpu.dot_dimension_numbers<[1], [0], [0], [1], [0, 0, 1, 1], [], []>} : vector<16x32xf32>, vector<32x32xf32>, vector<16x32xf32> -> vector<16x32xf32>
    %c0_21 = arith.constant 0 : index
    %c0_22 = arith.constant 0 : index
    %20 = vector.load %arg9[%c0_21, %c0_22] : memref<1x32xf32, #tpu.memory_space<vmem>>, vector<1x32xf32>
    %21 = vector.broadcast %20 : vector<1x32xf32> to vector<16x32xf32>
    %22 = arith.addf %19, %21 : vector<16x32xf32>
    %cst_23 = arith.constant 0.000000e+00 : f32
    %23 = vector.broadcast %cst_23 : f32 to vector<16x32xf32>
    %24 = vector.extract_strided_slice %12 {offsets = [0, 0], sizes = [16, 8], strides = [1, 1]} : vector<16x32xf32> to vector<16x8xf32>
    %25 = vector.shape_cast %24 : vector<16x8xf32> to vector<2x8x8xf32>
    %26 = vector.extract_strided_slice %17 {offsets = [0, 0], sizes = [16, 8], strides = [1, 1]} : vector<16x32xf32> to vector<16x8xf32>
    %27 = vector.shape_cast %26 : vector<16x8xf32> to vector<2x8x8xf32>
    %28 = vector.extract_strided_slice %22 {offsets = [0, 0], sizes = [16, 8], strides = [1, 1]} : vector<16x32xf32> to vector<16x8xf32>
    %29 = vector.shape_cast %28 : vector<16x8xf32> to vector<2x8x8xf32>
    "tpu.trace_start"() <{level = 10 : i32, message = "bqd,bkd->bqk"}> : () -> ()
    %cst_24 = arith.constant dense<0.000000e+00> : vector<2x8x8xf32>
    %30 = tpu.matmul %25, %27, %cst_24 {dimension_numbers = #tpu.dot_dimension_numbers<[2], [2], [1], [1], [0, 0, 0, 1, 1, 1], [0], [0]>} : vector<2x8x8xf32>, vector<2x8x8xf32>, vector<2x8x8xf32> -> vector<2x8x8xf32>
    "tpu.trace_stop"() : () -> ()
    %cst_25 = arith.constant dense<0xFF800000> : vector<2x8xf32>
    %31 = vector.multi_reduction <maximumf>, %30, %cst_25 [2] : vector<2x8x8xf32> to vector<2x8xf32>
    %32 = vector.shape_cast %31 : vector<2x8xf32> to vector<2x8x1xf32>
    %33 = vector.broadcast %32 : vector<2x8x1xf32> to vector<2x8x8xf32>
    %34 = arith.subf %30, %33 : vector<2x8x8xf32>
    %35 = math.exp %34 : vector<2x8x8xf32>
    %cst_26 = arith.constant dense<0.000000e+00> : vector<2x8xf32>
    %36 = vector.multi_reduction <add>, %35, %cst_26 [2] : vector<2x8x8xf32> to vector<2x8xf32>
    %37 = vector.shape_cast %36 : vector<2x8xf32> to vector<2x8x1xf32>
    %38 = tpu.reciprocal %37 {approx = true} : vector<2x8x1xf32> -> vector<2x8x1xf32>
    %39 = vector.broadcast %38 : vector<2x8x1xf32> to vector<2x8x8xf32>
    %40 = arith.mulf %35, %39 : vector<2x8x8xf32>
    "tpu.trace_start"() <{level = 10 : i32, message = "bqk,bkd->bqd"}> : () -> ()
    %cst_27 = arith.constant dense<0.000000e+00> : vector<2x8x8xf32>
    %41 = tpu.matmul %40, %29, %cst_27 {dimension_numbers = #tpu.dot_dimension_numbers<[2], [1], [1], [2], [0, 0, 0, 1, 1, 2], [0], [0]>} : vector<2x8x8xf32>, vector<2x8x8xf32>, vector<2x8x8xf32> -> vector<2x8x8xf32>
    "tpu.trace_stop"() : () -> ()
    %42 = vector.shape_cast %41 : vector<2x8x8xf32> to vector<16x8xf32>
    %c0_28 = arith.constant 0 : index
    %c0_29 = arith.constant 0 : index
    %c0_30 = arith.constant 0 : index
    %43 = vector.load %arg10[%c0_28, %c0_29, %c0_30] : memref<4x8x32xf32, #tpu.memory_space<vmem>>, vector<1x8x32xf32>
    %44 = vector.shape_cast %43 : vector<1x8x32xf32> to vector<8x32xf32>
    %cst_31 = arith.constant dense<0.000000e+00> : vector<16x32xf32>
    %45 = tpu.matmul %42, %44, %cst_31 {dimension_numbers = #tpu.dot_dimension_numbers<[1], [0], [0], [1], [0, 0, 1, 1], [], []>} : vector<16x8xf32>, vector<8x32xf32>, vector<16x32xf32> -> vector<16x32xf32>
    %46 = arith.addf %23, %45 : vector<16x32xf32>
    %47 = vector.extract_strided_slice %12 {offsets = [0, 8], sizes = [16, 8], strides = [1, 1]} : vector<16x32xf32> to vector<16x8xf32>
    %48 = vector.shape_cast %47 : vector<16x8xf32> to vector<2x8x8xf32>
    %49 = vector.extract_strided_slice %17 {offsets = [0, 8], sizes = [16, 8], strides = [1, 1]} : vector<16x32xf32> to vector<16x8xf32>
    %50 = vector.shape_cast %49 : vector<16x8xf32> to vector<2x8x8xf32>
    %51 = vector.extract_strided_slice %22 {offsets = [0, 8], sizes = [16, 8], strides = [1, 1]} : vector<16x32xf32> to vector<16x8xf32>
    %52 = vector.shape_cast %51 : vector<16x8xf32> to vector<2x8x8xf32>
    "tpu.trace_start"() <{level = 10 : i32, message = "bqd,bkd->bqk"}> : () -> ()
    %cst_32 = arith.constant dense<0.000000e+00> : vector<2x8x8xf32>
    %53 = tpu.matmul %48, %50, %cst_32 {dimension_numbers = #tpu.dot_dimension_numbers<[2], [2], [1], [1], [0, 0, 0, 1, 1, 1], [0], [0]>} : vector<2x8x8xf32>, vector<2x8x8xf32>, vector<2x8x8xf32> -> vector<2x8x8xf32>
    "tpu.trace_stop"() : () -> ()
    %cst_33 = arith.constant dense<0xFF800000> : vector<2x8xf32>
    %54 = vector.multi_reduction <maximumf>, %53, %cst_33 [2] : vector<2x8x8xf32> to vector<2x8xf32>
    %55 = vector.shape_cast %54 : vector<2x8xf32> to vector<2x8x1xf32>
    %56 = vector.broadcast %55 : vector<2x8x1xf32> to vector<2x8x8xf32>
    %57 = arith.subf %53, %56 : vector<2x8x8xf32>
    %58 = math.exp %57 : vector<2x8x8xf32>
    %cst_34 = arith.constant dense<0.000000e+00> : vector<2x8xf32>
    %59 = vector.multi_reduction <add>, %58, %cst_34 [2] : vector<2x8x8xf32> to vector<2x8xf32>
    %60 = vector.shape_cast %59 : vector<2x8xf32> to vector<2x8x1xf32>
    %61 = tpu.reciprocal %60 {approx = true} : vector<2x8x1xf32> -> vector<2x8x1xf32>
    %62 = vector.broadcast %61 : vector<2x8x1xf32> to vector<2x8x8xf32>
    %63 = arith.mulf %58, %62 : vector<2x8x8xf32>
    "tpu.trace_start"() <{level = 10 : i32, message = "bqk,bkd->bqd"}> : () -> ()
    %cst_35 = arith.constant dense<0.000000e+00> : vector<2x8x8xf32>
    %64 = tpu.matmul %63, %52, %cst_35 {dimension_numbers = #tpu.dot_dimension_numbers<[2], [1], [1], [2], [0, 0, 0, 1, 1, 2], [0], [0]>} : vector<2x8x8xf32>, vector<2x8x8xf32>, vector<2x8x8xf32> -> vector<2x8x8xf32>
    "tpu.trace_stop"() : () -> ()
    %65 = vector.shape_cast %64 : vector<2x8x8xf32> to vector<16x8xf32>
    %c1 = arith.constant 1 : index
    %c0_36 = arith.constant 0 : index
    %c0_37 = arith.constant 0 : index
    %66 = vector.load %arg10[%c1, %c0_36, %c0_37] : memref<4x8x32xf32, #tpu.memory_space<vmem>>, vector<1x8x32xf32>
    %67 = vector.shape_cast %66 : vector<1x8x32xf32> to vector<8x32xf32>
    %cst_38 = arith.constant dense<0.000000e+00> : vector<16x32xf32>
    %68 = tpu.matmul %65, %67, %cst_38 {dimension_numbers = #tpu.dot_dimension_numbers<[1], [0], [0], [1], [0, 0, 1, 1], [], []>} : vector<16x8xf32>, vector<8x32xf32>, vector<16x32xf32> -> vector<16x32xf32>
    %69 = arith.addf %46, %68 : vector<16x32xf32>
    %70 = vector.extract_strided_slice %12 {offsets = [0, 16], sizes = [16, 8], strides = [1, 1]} : vector<16x32xf32> to vector<16x8xf32>
    %71 = vector.shape_cast %70 : vector<16x8xf32> to vector<2x8x8xf32>
    %72 = vector.extract_strided_slice %17 {offsets = [0, 16], sizes = [16, 8], strides = [1, 1]} : vector<16x32xf32> to vector<16x8xf32>
    %73 = vector.shape_cast %72 : vector<16x8xf32> to vector<2x8x8xf32>
    %74 = vector.extract_strided_slice %22 {offsets = [0, 16], sizes = [16, 8], strides = [1, 1]} : vector<16x32xf32> to vector<16x8xf32>
    %75 = vector.shape_cast %74 : vector<16x8xf32> to vector<2x8x8xf32>
    "tpu.trace_start"() <{level = 10 : i32, message = "bqd,bkd->bqk"}> : () -> ()
    %cst_39 = arith.constant dense<0.000000e+00> : vector<2x8x8xf32>
    %76 = tpu.matmul %71, %73, %cst_39 {dimension_numbers = #tpu.dot_dimension_numbers<[2], [2], [1], [1], [0, 0, 0, 1, 1, 1], [0], [0]>} : vector<2x8x8xf32>, vector<2x8x8xf32>, vector<2x8x8xf32> -> vector<2x8x8xf32>
    "tpu.trace_stop"() : () -> ()
    %cst_40 = arith.constant dense<0xFF800000> : vector<2x8xf32>
    %77 = vector.multi_reduction <maximumf>, %76, %cst_40 [2] : vector<2x8x8xf32> to vector<2x8xf32>
    %78 = vector.shape_cast %77 : vector<2x8xf32> to vector<2x8x1xf32>
    %79 = vector.broadcast %78 : vector<2x8x1xf32> to vector<2x8x8xf32>
    %80 = arith.subf %76, %79 : vector<2x8x8xf32>
    %81 = math.exp %80 : vector<2x8x8xf32>
    %cst_41 = arith.constant dense<0.000000e+00> : vector<2x8xf32>
    %82 = vector.multi_reduction <add>, %81, %cst_41 [2] : vector<2x8x8xf32> to vector<2x8xf32>
    %83 = vector.shape_cast %82 : vector<2x8xf32> to vector<2x8x1xf32>
    %84 = tpu.reciprocal %83 {approx = true} : vector<2x8x1xf32> -> vector<2x8x1xf32>
    %85 = vector.broadcast %84 : vector<2x8x1xf32> to vector<2x8x8xf32>
    %86 = arith.mulf %81, %85 : vector<2x8x8xf32>
    "tpu.trace_start"() <{level = 10 : i32, message = "bqk,bkd->bqd"}> : () -> ()
    %cst_42 = arith.constant dense<0.000000e+00> : vector<2x8x8xf32>
    %87 = tpu.matmul %86, %75, %cst_42 {dimension_numbers = #tpu.dot_dimension_numbers<[2], [1], [1], [2], [0, 0, 0, 1, 1, 2], [0], [0]>} : vector<2x8x8xf32>, vector<2x8x8xf32>, vector<2x8x8xf32> -> vector<2x8x8xf32>
    "tpu.trace_stop"() : () -> ()
    %88 = vector.shape_cast %87 : vector<2x8x8xf32> to vector<16x8xf32>
    %c2 = arith.constant 2 : index
    %c0_43 = arith.constant 0 : index
    %c0_44 = arith.constant 0 : index
    %89 = vector.load %arg10[%c2, %c0_43, %c0_44] : memref<4x8x32xf32, #tpu.memory_space<vmem>>, vector<1x8x32xf32>
    %90 = vector.shape_cast %89 : vector<1x8x32xf32> to vector<8x32xf32>
    %cst_45 = arith.constant dense<0.000000e+00> : vector<16x32xf32>
    %91 = tpu.matmul %88, %90, %cst_45 {dimension_numbers = #tpu.dot_dimension_numbers<[1], [0], [0], [1], [0, 0, 1, 1], [], []>} : vector<16x8xf32>, vector<8x32xf32>, vector<16x32xf32> -> vector<16x32xf32>
    %92 = arith.addf %69, %91 : vector<16x32xf32>
    %93 = vector.extract_strided_slice %12 {offsets = [0, 24], sizes = [16, 8], strides = [1, 1]} : vector<16x32xf32> to vector<16x8xf32>
    %94 = vector.shape_cast %93 : vector<16x8xf32> to vector<2x8x8xf32>
    %95 = vector.extract_strided_slice %17 {offsets = [0, 24], sizes = [16, 8], strides = [1, 1]} : vector<16x32xf32> to vector<16x8xf32>
    %96 = vector.shape_cast %95 : vector<16x8xf32> to vector<2x8x8xf32>
    %97 = vector.extract_strided_slice %22 {offsets = [0, 24], sizes = [16, 8], strides = [1, 1]} : vector<16x32xf32> to vector<16x8xf32>
    %98 = vector.shape_cast %97 : vector<16x8xf32> to vector<2x8x8xf32>
    "tpu.trace_start"() <{level = 10 : i32, message = "bqd,bkd->bqk"}> : () -> ()
    %cst_46 = arith.constant dense<0.000000e+00> : vector<2x8x8xf32>
    %99 = tpu.matmul %94, %96, %cst_46 {dimension_numbers = #tpu.dot_dimension_numbers<[2], [2], [1], [1], [0, 0, 0, 1, 1, 1], [0], [0]>} : vector<2x8x8xf32>, vector<2x8x8xf32>, vector<2x8x8xf32> -> vector<2x8x8xf32>
    "tpu.trace_stop"() : () -> ()
    %cst_47 = arith.constant dense<0xFF800000> : vector<2x8xf32>
    %100 = vector.multi_reduction <maximumf>, %99, %cst_47 [2] : vector<2x8x8xf32> to vector<2x8xf32>
    %101 = vector.shape_cast %100 : vector<2x8xf32> to vector<2x8x1xf32>
    %102 = vector.broadcast %101 : vector<2x8x1xf32> to vector<2x8x8xf32>
    %103 = arith.subf %99, %102 : vector<2x8x8xf32>
    %104 = math.exp %103 : vector<2x8x8xf32>
    %cst_48 = arith.constant dense<0.000000e+00> : vector<2x8xf32>
    %105 = vector.multi_reduction <add>, %104, %cst_48 [2] : vector<2x8x8xf32> to vector<2x8xf32>
    %106 = vector.shape_cast %105 : vector<2x8xf32> to vector<2x8x1xf32>
    %107 = tpu.reciprocal %106 {approx = true} : vector<2x8x1xf32> -> vector<2x8x1xf32>
    %108 = vector.broadcast %107 : vector<2x8x1xf32> to vector<2x8x8xf32>
    %109 = arith.mulf %104, %108 : vector<2x8x8xf32>
    "tpu.trace_start"() <{level = 10 : i32, message = "bqk,bkd->bqd"}> : () -> ()
    %cst_49 = arith.constant dense<0.000000e+00> : vector<2x8x8xf32>
    %110 = tpu.matmul %109, %98, %cst_49 {dimension_numbers = #tpu.dot_dimension_numbers<[2], [1], [1], [2], [0, 0, 0, 1, 1, 2], [0], [0]>} : vector<2x8x8xf32>, vector<2x8x8xf32>, vector<2x8x8xf32> -> vector<2x8x8xf32>
    "tpu.trace_stop"() : () -> ()
    %111 = vector.shape_cast %110 : vector<2x8x8xf32> to vector<16x8xf32>
    %c3 = arith.constant 3 : index
    %c0_50 = arith.constant 0 : index
    %c0_51 = arith.constant 0 : index
    %112 = vector.load %arg10[%c3, %c0_50, %c0_51] : memref<4x8x32xf32, #tpu.memory_space<vmem>>, vector<1x8x32xf32>
    %113 = vector.shape_cast %112 : vector<1x8x32xf32> to vector<8x32xf32>
    %cst_52 = arith.constant dense<0.000000e+00> : vector<16x32xf32>
    %114 = tpu.matmul %111, %113, %cst_52 {dimension_numbers = #tpu.dot_dimension_numbers<[1], [0], [0], [1], [0, 0, 1, 1], [], []>} : vector<16x8xf32>, vector<8x32xf32>, vector<16x32xf32> -> vector<16x32xf32>
    %115 = arith.addf %92, %114 : vector<16x32xf32>
    %c0_53 = arith.constant 0 : index
    %c0_54 = arith.constant 0 : index
    %116 = vector.load %arg11[%c0_53, %c0_54] : memref<1x32xf32, #tpu.memory_space<vmem>>, vector<1x32xf32>
    %117 = vector.broadcast %116 : vector<1x32xf32> to vector<16x32xf32>
    %118 = arith.addf %115, %117 : vector<16x32xf32>
    %c0_55 = arith.constant 0 : index
    %c0_56 = arith.constant 0 : index
    %119 = vector.load %arg12[%c0_55, %c0_56] : memref<1x32xf32, #tpu.memory_space<vmem>>, vector<1x32xf32>
    %c0_57 = arith.constant 0 : index
    %c0_58 = arith.constant 0 : index
    %120 = vector.load %arg13[%c0_57, %c0_58] : memref<1x32xf32, #tpu.memory_space<vmem>>, vector<1x32xf32>
    %cst_59 = arith.constant dense<0.000000e+00> : vector<16xf32>
    %121 = vector.multi_reduction <add>, %118, %cst_59 [1] : vector<16x32xf32> to vector<16xf32>
    %122 = vector.shape_cast %121 : vector<16xf32> to vector<16x1xf32>
    %cst_60 = arith.constant 3.200000e+01 : f32
    %123 = vector.broadcast %cst_60 : f32 to vector<16x1xf32>
    %124 = arith.divf %122, %123 : vector<16x1xf32>
    %125 = vector.broadcast %124 : vector<16x1xf32> to vector<16x32xf32>
    %126 = arith.subf %118, %125 : vector<16x32xf32>
    %127 = arith.mulf %126, %126 : vector<16x32xf32>
    %cst_61 = arith.constant dense<0.000000e+00> : vector<16xf32>
    %128 = vector.multi_reduction <add>, %127, %cst_61 [1] : vector<16x32xf32> to vector<16xf32>
    %129 = vector.shape_cast %128 : vector<16xf32> to vector<16x1xf32>
    %cst_62 = arith.constant 3.200000e+01 : f32
    %130 = vector.broadcast %cst_62 : f32 to vector<16x1xf32>
    %131 = arith.divf %129, %130 : vector<16x1xf32>
    %cst_63 = arith.constant 9.99999974E-6 : f32
    %132 = vector.broadcast %cst_63 : f32 to vector<16x1xf32>
    %133 = arith.addf %131, %132 : vector<16x1xf32>
    %134 = math.rsqrt %133 : vector<16x1xf32>
    %135 = vector.broadcast %134 : vector<16x1xf32> to vector<16x32xf32>
    %136 = arith.mulf %126, %135 : vector<16x32xf32>
    %137 = vector.broadcast %119 : vector<1x32xf32> to vector<16x32xf32>
    %138 = arith.mulf %136, %137 : vector<16x32xf32>
    %139 = vector.broadcast %120 : vector<1x32xf32> to vector<16x32xf32>
    %140 = arith.addf %138, %139 : vector<16x32xf32>
    %c0_64 = arith.constant 0 : index
    %c0_65 = arith.constant 0 : index
    %141 = vector.load %arg14[%c0_64, %c0_65] : memref<32x128xf32, #tpu.memory_space<vmem>>, vector<32x128xf32>
    %cst_66 = arith.constant dense<0.000000e+00> : vector<16x128xf32>
    %142 = tpu.matmul %140, %141, %cst_66 {dimension_numbers = #tpu.dot_dimension_numbers<[1], [0], [0], [1], [0, 0, 1, 1], [], []>} : vector<16x32xf32>, vector<32x128xf32>, vector<16x128xf32> -> vector<16x128xf32>
    %c0_67 = arith.constant 0 : index
    %c0_68 = arith.constant 0 : index
    %143 = vector.load %arg15[%c0_67, %c0_68] : memref<1x128xf32, #tpu.memory_space<vmem>>, vector<1x128xf32>
    %144 = vector.broadcast %143 : vector<1x128xf32> to vector<16x128xf32>
    %145 = arith.addf %142, %144 : vector<16x128xf32>
    %cst_69 = arith.constant 0.000000e+00 : f32
    %146 = vector.broadcast %cst_69 : f32 to vector<16x128xf32>
    %147 = arith.maximumf %145, %146 : vector<16x128xf32>
    %c0_70 = arith.constant 0 : index
    %c0_71 = arith.constant 0 : index
    %148 = vector.load %arg16[%c0_70, %c0_71] : memref<128x32xf32, #tpu.memory_space<vmem>>, vector<128x32xf32>
    %cst_72 = arith.constant dense<0.000000e+00> : vector<16x32xf32>
    %149 = tpu.matmul %147, %148, %cst_72 {dimension_numbers = #tpu.dot_dimension_numbers<[1], [0], [0], [1], [0, 0, 1, 1], [], []>} : vector<16x128xf32>, vector<128x32xf32>, vector<16x32xf32> -> vector<16x32xf32>
    %c0_73 = arith.constant 0 : index
    %c0_74 = arith.constant 0 : index
    %150 = vector.load %arg17[%c0_73, %c0_74] : memref<1x32xf32, #tpu.memory_space<vmem>>, vector<1x32xf32>
    %151 = vector.broadcast %150 : vector<1x32xf32> to vector<16x32xf32>
    %152 = arith.addf %149, %151 : vector<16x32xf32>
    %153 = arith.addf %152, %140 : vector<16x32xf32>
    %c0_75 = arith.constant 0 : index
    %c0_76 = arith.constant 0 : index
    %154 = vector.load %arg18[%c0_75, %c0_76] : memref<1x32xf32, #tpu.memory_space<vmem>>, vector<1x32xf32>
    %c0_77 = arith.constant 0 : index
    %c0_78 = arith.constant 0 : index
    %155 = vector.load %arg19[%c0_77, %c0_78] : memref<1x32xf32, #tpu.memory_space<vmem>>, vector<1x32xf32>
    %cst_79 = arith.constant dense<0.000000e+00> : vector<16xf32>
    %156 = vector.multi_reduction <add>, %153, %cst_79 [1] : vector<16x32xf32> to vector<16xf32>
    %157 = vector.shape_cast %156 : vector<16xf32> to vector<16x1xf32>
    %cst_80 = arith.constant 3.200000e+01 : f32
    %158 = vector.broadcast %cst_80 : f32 to vector<16x1xf32>
    %159 = arith.divf %157, %158 : vector<16x1xf32>
    %160 = vector.broadcast %159 : vector<16x1xf32> to vector<16x32xf32>
    %161 = arith.subf %153, %160 : vector<16x32xf32>
    %162 = arith.mulf %161, %161 : vector<16x32xf32>
    %cst_81 = arith.constant dense<0.000000e+00> : vector<16xf32>
    %163 = vector.multi_reduction <add>, %162, %cst_81 [1] : vector<16x32xf32> to vector<16xf32>
    %164 = vector.shape_cast %163 : vector<16xf32> to vector<16x1xf32>
    %cst_82 = arith.constant 3.200000e+01 : f32
    %165 = vector.broadcast %cst_82 : f32 to vector<16x1xf32>
    %166 = arith.divf %164, %165 : vector<16x1xf32>
    %cst_83 = arith.constant 9.99999974E-6 : f32
    %167 = vector.broadcast %cst_83 : f32 to vector<16x1xf32>
    %168 = arith.addf %166, %167 : vector<16x1xf32>
    %169 = math.rsqrt %168 : vector<16x1xf32>
    %170 = vector.broadcast %169 : vector<16x1xf32> to vector<16x32xf32>
    %171 = arith.mulf %161, %170 : vector<16x32xf32>
    %172 = vector.broadcast %154 : vector<1x32xf32> to vector<16x32xf32>
    %173 = arith.mulf %171, %172 : vector<16x32xf32>
    %174 = vector.broadcast %155 : vector<1x32xf32> to vector<16x32xf32>
    %175 = arith.addf %173, %174 : vector<16x32xf32>
    %176 = vector.shape_cast %175 : vector<16x32xf32> to vector<2x8x32xf32>
    %c0_84 = arith.constant 0 : index
    %c0_85 = arith.constant 0 : index
    %c0_86 = arith.constant 0 : index
    %177 = vector.load %arg20[%c0_84, %c0_85, %c0_86] : memref<2x8x32xf32, #tpu.memory_space<vmem>>, vector<2x8x32xf32>
    tpu.vector_store %arg20[%c0_84, %c0_85, %c0_86], %176 {strides = array<i32>} : memref<2x8x32xf32, #tpu.memory_space<vmem>>, vector<2x8x32xf32>,
    return
  }
  func.func @transform_0(%arg0: i32) -> (i32, i32, i32) {
    %c0_i32 = arith.constant 0 : i32
    %c0_i32_0 = arith.constant 0 : i32
    %c0_i32_1 = arith.constant 0 : i32
    return %arg0, %c0_i32, %c0_i32_0 : i32, i32, i32
  }
  func.func @transform_1(%arg0: i32) -> (i32, i32, i32) {
    %c0_i32 = arith.constant 0 : i32
    %c0_i32_0 = arith.constant 0 : i32
    %c0_i32_1 = arith.constant 0 : i32
    return %arg0, %c0_i32, %c0_i32_0 : i32, i32, i32
  }
  func.func @transform_2(%arg0: i32) -> (i32, i32, i32) {
    %c0_i32 = arith.constant 0 : i32
    %c0_i32_0 = arith.constant 0 : i32
    %c0_i32_1 = arith.constant 0 : i32
    return %arg0, %c0_i32, %c0_i32_0 : i32, i32, i32
  }
  func.func @transform_3(%arg0: i32) -> (i32, i32) {
    %c0_i32 = arith.constant 0 : i32
    %c0_i32_0 = arith.constant 0 : i32
    %c0_i32_1 = arith.constant 0 : i32
    return %c0_i32, %c0_i32_0 : i32, i32
  }
  func.func @transform_4(%arg0: i32) -> (i32, i32) {
    %c0_i32 = arith.constant 0 : i32
    %c0_i32_0 = arith.constant 0 : i32
    %c0_i32_1 = arith.constant 0 : i32
    return %c0_i32, %c0_i32_0 : i32, i32
  }
  func.func @transform_5(%arg0: i32) -> (i32, i32) {
    %c0_i32 = arith.constant 0 : i32
    %c0_i32_0 = arith.constant 0 : i32
    %c0_i32_1 = arith.constant 0 : i32
    return %c0_i32, %c0_i32_0 : i32, i32
  }
  func.func @transform_6(%arg0: i32) -> (i32, i32) {
    %c0_i32 = arith.constant 0 : i32
    %c0_i32_0 = arith.constant 0 : i32
    %c0_i32_1 = arith.constant 0 : i32
    return %c0_i32, %c0_i32_0 : i32, i32
  }
  func.func @transform_7(%arg0: i32) -> (i32, i32) {
    %c0_i32 = arith.constant 0 : i32
    %c0_i32_0 = arith.constant 0 : i32
    %c0_i32_1 = arith.constant 0 : i32
    return %c0_i32, %c0_i32_0 : i32, i32
  }
  func.func @transform_8(%arg0: i32) -> (i32, i32) {
    %c0_i32 = arith.constant 0 : i32
    %c0_i32_0 = arith.constant 0 : i32
    %c0_i32_1 = arith.constant 0 : i32
    return %c0_i32, %c0_i32_0 : i32, i32
  }
  func.func @transform_9(%arg0: i32) -> (i32, i32, i32) {
    %c0_i32 = arith.constant 0 : i32
    %c0_i32_0 = arith.constant 0 : i32
    %c0_i32_1 = arith.constant 0 : i32
    %c0_i32_2 = arith.constant 0 : i32
    return %c0_i32, %c0_i32_0, %c0_i32_1 : i32, i32, i32
  }
  func.func @transform_10(%arg0: i32) -> (i32, i32) {
    %c0_i32 = arith.constant 0 : i32
    %c0_i32_0 = arith.constant 0 : i32
    %c0_i32_1 = arith.constant 0 : i32
    return %c0_i32, %c0_i32_0 : i32, i32
  }
  func.func @transform_11(%arg0: i32) -> (i32, i32) {
    %c0_i32 = arith.constant 0 : i32
    %c0_i32_0 = arith.constant 0 : i32
    %c0_i32_1 = arith.constant 0 : i32
    return %c0_i32, %c0_i32_0 : i32, i32
  }
  func.func @transform_12(%arg0: i32) -> (i32, i32) {
    %c0_i32 = arith.constant 0 : i32
    %c0_i32_0 = arith.constant 0 : i32
    %c0_i32_1 = arith.constant 0 : i32
    return %c0_i32, %c0_i32_0 : i32, i32
  }
  func.func @transform_13(%arg0: i32) -> (i32, i32) {
    %c0_i32 = arith.constant 0 : i32
    %c0_i32_0 = arith.constant 0 : i32
    %c0_i32_1 = arith.constant 0 : i32
    return %c0_i32, %c0_i32_0 : i32, i32
  }
  func.func @transform_14(%arg0: i32) -> (i32, i32) {
    %c0_i32 = arith.constant 0 : i32
    %c0_i32_0 = arith.constant 0 : i32
    %c0_i32_1 = arith.constant 0 : i32
    return %c0_i32, %c0_i32_0 : i32, i32
  }
  func.func @transform_15(%arg0: i32) -> (i32, i32) {
    %c0_i32 = arith.constant 0 : i32
    %c0_i32_0 = arith.constant 0 : i32
    %c0_i32_1 = arith.constant 0 : i32
    return %c0_i32, %c0_i32_0 : i32, i32
  }
  func.func @transform_16(%arg0: i32) -> (i32, i32) {
    %c0_i32 = arith.constant 0 : i32
    %c0_i32_0 = arith.constant 0 : i32
    %c0_i32_1 = arith.constant 0 : i32
    return %c0_i32, %c0_i32_0 : i32, i32
  }
  func.func @transform_17(%arg0: i32) -> (i32, i32) {
    %c0_i32 = arith.constant 0 : i32
    %c0_i32_0 = arith.constant 0 : i32
    %c0_i32_1 = arith.constant 0 : i32
    return %c0_i32, %c0_i32_0 : i32, i32
  }
  func.func @transform_18(%arg0: i32) -> (i32, i32) {
    %c0_i32 = arith.constant 0 : i32
    %c0_i32_0 = arith.constant 0 : i32
    %c0_i32_1 = arith.constant 0 : i32
    return %c0_i32, %c0_i32_0 : i32, i32
  }
  func.func @transform_19(%arg0: i32) -> (i32, i32, i32) {
    %c0_i32 = arith.constant 0 : i32
    %c0_i32_0 = arith.constant 0 : i32
    %c0_i32_1 = arith.constant 0 : i32
    return %arg0, %c0_i32, %c0_i32_0 : i32, i32, i32
  }
}

</mosaic_0001>

<llo_original>
// kernel: tpu_custom_call.1
$region0: #{tpu_custom_call.1}
  #allocation0 [shape = 'u32[]', space=smem, size = 0x4, offset = 0x4, fixed_abs, tag = 'smem constant byte address 0x4 - core index']
  #allocation1 [shape = 'u32[144,128]{1,0:T(1,128)}', space=vmem, size = 0x12000, scoped, tag = 'internal scratch']
  %s0 = inlined_call_operand.hbm [shape: f32[2,8,32], index: 0, kind: input, shape index: {}]
  %s1 = inlined_call_operand.hbm [shape: f32[2,8,32], index: 1, kind: input, shape index: {}]
  %s2 = inlined_call_operand.hbm [shape: f32[2,8,32], index: 2, kind: input, shape index: {}]
  %s3 = inlined_call_operand.vmem [shape: f32[32,32], index: 3, kind: input, shape index: {}]
  %s4 = inlined_call_operand.vmem [shape: f32[1,32], index: 4, kind: input, shape index: {}]
  %s5 = inlined_call_operand.vmem [shape: f32[32,32], index: 5, kind: input, shape index: {}]
  %s6 = inlined_call_operand.vmem [shape: f32[1,32], index: 6, kind: input, shape index: {}]
  %s7 = inlined_call_operand.vmem [shape: f32[32,32], index: 7, kind: input, shape index: {}]
  %s8 = inlined_call_operand.vmem [shape: f32[1,32], index: 8, kind: input, shape index: {}]
  %s9 = inlined_call_operand.vmem [shape: f32[4,8,32], index: 9, kind: input, shape index: {}]
  %s10 = inlined_call_operand.vmem [shape: f32[1,32], index: 10, kind: input, shape index: {}]
  %s11 = inlined_call_operand.vmem [shape: f32[1,32], index: 11, kind: input, shape index: {}]
  %s12 = inlined_call_operand.vmem [shape: f32[1,32], index: 12, kind: input, shape index: {}]
  %s13 = inlined_call_operand.vmem [shape: f32[32,128], index: 13, kind: input, shape index: {}]
  %s14 = inlined_call_operand.vmem [shape: f32[1,128], index: 14, kind: input, shape index: {}]
  %s15 = inlined_call_operand.vmem [shape: f32[128,32], index: 15, kind: input, shape index: {}]
  %s16 = inlined_call_operand.vmem [shape: f32[1,32], index: 16, kind: input, shape index: {}]
  %s17 = inlined_call_operand.vmem [shape: f32[1,32], index: 17, kind: input, shape index: {}]
  %s18 = inlined_call_operand.vmem [shape: f32[1,32], index: 18, kind: input, shape index: {}]
  %s19 = inlined_call_operand.hbm [shape: f32[2,8,32], index: 19, kind: output, shape index: {}]
  %s20 = sld [smem:[#allocation0]]
  $region98: #{tpu_custom_call.1} parent=0
    _
  %s22 = ssub.s32 1, %s20
  %s23 = scalar_select 0, %s22, %s20
  $region1: #{tpu_custom_call.1} parent=0
    #allocation2 [shape = 'u8[8192]{0}', space=vmem, size = 0x2000, scoped, tag = 'input window, operand 0, single buffered']
    #allocation3 [shape = 's32[1]{0}', space=sflag, size = 0x4, scoped, tag = 'scoped memory for tpu_custom_call.1']
    #allocation4 [shape = 's32[1]{0}', space=sflag, size = 0x4, scoped, tag = 'scoped memory for tpu_custom_call.1']
    #allocation5 [shape = 'u8[8192]{0}', space=vmem, size = 0x2000, scoped, tag = 'input window, operand 1, single buffered']
    #allocation6 [shape = 's32[1]{0}', space=sflag, size = 0x4, scoped, tag = 'scoped memory for tpu_custom_call.1']
    #allocation7 [shape = 'u8[8192]{0}', space=vmem, size = 0x2000, scoped, tag = 'input window, operand 2, single buffered']
    #allocation8 [shape = 'u8[8192]{0}', space=vmem, size = 0x2000, scoped, tag = 'output window, operand 0, single buffered']
    %24 = vsyncpa [#allocation3], 0
    %25 = vsyncpa [#allocation6], 0
    %26 = vsyncpa [#allocation4], 0
    // Predicated region
    $region2: #{tpu_custom_call.1} parent=1 // pred_check
      _
    $region3: #{tpu_custom_call.1} parent=1 // pred_check_branch
      %28 = sbr.rel (0) target = $region5
    $region4: #{tpu_custom_call.1} parent=1 // pred_region
      %s30 = ssub.s32 256, 256
      %31 = vsyncadd [#allocation3], %s30
      %s32 = sshll.u32 [#allocation2], 4
      %s33 = int_to_ptr.vmem [resolvable:$true] %s32
      %38 = dma.hbm_to_vmem [thread:$0]  %s0, 256, %s33, [#allocation3], 128, 128, 8
    $region5: #{tpu_custom_call.1} parent=1 // pred_fallthru
      _
    // Predicated region
    $region6: #{tpu_custom_call.1} parent=1 // pred_check
      _
    $region7: #{tpu_custom_call.1} parent=1 // pred_check_branch
      %40 = sbr.rel (0) target = $region9
    $region8: #{tpu_custom_call.1} parent=1 // pred_region
      %s42 = ssub.s32 256, 256
      %43 = vsyncadd [#allocation6], %s42
      %s44 = sshll.u32 [#allocation5], 4
      %s45 = int_to_ptr.vmem [resolvable:$true] %s44
      %50 = dma.hbm_to_vmem [thread:$0]  %s1, 256, %s45, [#allocation6], 128, 128, 8
    $region9: #{tpu_custom_call.1} parent=1 // pred_fallthru
      _
    // Predicated region
    $region10: #{tpu_custom_call.1} parent=1 // pred_check
      _
    $region11: #{tpu_custom_call.1} parent=1 // pred_check_branch
      %52 = sbr.rel (0) target = $region13
    $region12: #{tpu_custom_call.1} parent=1 // pred_region
      %s54 = ssub.s32 256, 256
      %55 = vsyncadd [#allocation6], %s54
      %s56 = sshll.u32 [#allocation7], 4
      %s57 = int_to_ptr.vmem [resolvable:$true] %s56
      %62 = dma.hbm_to_vmem [thread:$0]  %s2, 256, %s57, [#allocation6], 128, 128, 8
    $region13: #{tpu_custom_call.1} parent=1 // pred_fallthru
      _
    // Predicated region
    $region14: #{tpu_custom_call.1} parent=1 // pred_check
      _
    $region15: #{tpu_custom_call.1} parent=1 // pred_check_branch
      %64 = sbr.rel (0) target = $region17
    $region16: #{tpu_custom_call.1} parent=1 // pred_region
      _
    $region17: #{tpu_custom_call.1} parent=1 // pred_fallthru
      _
    // Predicated region
    $region18: #{tpu_custom_call.1} parent=1 // pred_check
      _
    $region19: #{tpu_custom_call.1} parent=1 // pred_check_branch
      %66 = sbr.rel (0) target = $region21
    $region20: #{tpu_custom_call.1} parent=1 // pred_region
      _
    $region21: #{tpu_custom_call.1} parent=1 // pred_fallthru
      _
    // Predicated region
    $region22: #{tpu_custom_call.1} parent=1 // pred_check
      _
    $region23: #{tpu_custom_call.1} parent=1 // pred_check_branch
      %68 = sbr.rel (0) target = $region25
    $region24: #{tpu_custom_call.1} parent=1 // pred_region
      _
    $region25: #{tpu_custom_call.1} parent=1 // pred_fallthru
      _
    // Predicated region
    $region26: #{tpu_custom_call.1} parent=1 // pred_check
      _
    $region27: #{tpu_custom_call.1} parent=1 // pred_check_branch
      %70 = sbr.rel (0) target = $region29
    $region28: #{tpu_custom_call.1} parent=1 // pred_region
      _
    $region29: #{tpu_custom_call.1} parent=1 // pred_fallthru
      _
    // Predicated region
    $region30: #{tpu_custom_call.1} parent=1 // pred_check
      _
    $region31: #{tpu_custom_call.1} parent=1 // pred_check_branch
      %72 = sbr.rel (0) target = $region33
    $region32: #{tpu_custom_call.1} parent=1 // pred_region
      _
    $region33: #{tpu_custom_call.1} parent=1 // pred_fallthru
      _
    // Predicated region
    $region34: #{tpu_custom_call.1} parent=1 // pred_check
      _
    $region35: #{tpu_custom_call.1} parent=1 // pred_check_branch
      %74 = sbr.rel (0) target = $region37
    $region36: #{tpu_custom_call.1} parent=1 // pred_region
      _
    $region37: #{tpu_custom_call.1} parent=1 // pred_fallthru
      _
    // Predicated region
    $region38: #{tpu_custom_call.1} parent=1 // pred_check
      _
    $region39: #{tpu_custom_call.1} parent=1 // pred_check_branch
      %76 = sbr.rel (0) target = $region41
    $region40: #{tpu_custom_call.1} parent=1 // pred_region
      _
    $region41: #{tpu_custom_call.1} parent=1 // pred_fallthru
      _
    // Predicated region
    $region42: #{tpu_custom_call.1} parent=1 // pred_check
      _
    $region43: #{tpu_custom_call.1} parent=1 // pred_check_branch
      %78 = sbr.rel (0) target = $region45
    $region44: #{tpu_custom_call.1} parent=1 // pred_region
      _
    $region45: #{tpu_custom_call.1} parent=1 // pred_fallthru
      _
    // Predicated region
    $region46: #{tpu_custom_call.1} parent=1 // pred_check
      _
    $region47: #{tpu_custom_call.1} parent=1 // pred_check_branch
      %80 = sbr.rel (0) target = $region49
    $region48: #{tpu_custom_call.1} parent=1 // pred_region
      _
    $region49: #{tpu_custom_call.1} parent=1 // pred_fallthru
      _
    // Predicated region
    $region50: #{tpu_custom_call.1} parent=1 // pred_check
      _
    $region51: #{tpu_custom_call.1} parent=1 // pred_check_branch
      %82 = sbr.rel (0) target = $region53
    $region52: #{tpu_custom_call.1} parent=1 // pred_region
      _
    $region53: #{tpu_custom_call.1} parent=1 // pred_fallthru
      _
    // Predicated region
    $region54: #{tpu_custom_call.1} parent=1 // pred_check
      _
    $region55: #{tpu_custom_call.1} parent=1 // pred_check_branch
      %84 = sbr.rel (0) target = $region57
    $region56: #{tpu_custom_call.1} parent=1 // pred_region
      _
    $region57: #{tpu_custom_call.1} parent=1 // pred_fallthru
      _
    // Predicated region
    $region58: #{tpu_custom_call.1} parent=1 // pred_check
      _
    $region59: #{tpu_custom_call.1} parent=1 // pred_check_branch
      %86 = sbr.rel (0) target = $region61
    $region60: #{tpu_custom_call.1} parent=1 // pred_region
      _
    $region61: #{tpu_custom_call.1} parent=1 // pred_fallthru
      _
    // Predicated region
    $region62: #{tpu_custom_call.1} parent=1 // pred_check
      _
    $region63: #{tpu_custom_call.1} parent=1 // pred_check_branch
      %88 = sbr.rel (0) target = $region65
    $region64: #{tpu_custom_call.1} parent=1 // pred_region
      _
    $region65: #{tpu_custom_call.1} parent=1 // pred_fallthru
      _
    // Predicated region
    $region66: #{tpu_custom_call.1} parent=1 // pred_check
      _
    $region67: #{tpu_custom_call.1} parent=1 // pred_check_branch
      %90 = sbr.rel (0) target = $region69
    $region68: #{tpu_custom_call.1} parent=1 // pred_region
      _
    $region69: #{tpu_custom_call.1} parent=1 // pred_fallthru
      _
    // Predicated region
    $region70: #{tpu_custom_call.1} parent=1 // pred_check
      _
    $region71: #{tpu_custom_call.1} parent=1 // pred_check_branch
      %92 = sbr.rel (0) target = $region73
    $region72: #{tpu_custom_call.1} parent=1 // pred_region
      _
    $region73: #{tpu_custom_call.1} parent=1 // pred_fallthru
      _
    // Predicated region
    $region74: #{tpu_custom_call.1} parent=1 // pred_check
      _
    $region75: #{tpu_custom_call.1} parent=1 // pred_check_branch
      %94 = sbr.rel (0) target = $region77
    $region76: #{tpu_custom_call.1} parent=1 // pred_region
      _
    $region77: #{tpu_custom_call.1} parent=1 // pred_fallthru
      _
    // Predicated region
    $region78: #{tpu_custom_call.1} parent=1 // pred_check
      _
    $region79: #{tpu_custom_call.1} parent=1 // pred_check_branch
      %96 = sbr.rel (0) target = $region81
    $region80: #{tpu_custom_call.1} parent=1 // pred_region
      %97 = dma.done [#allocation3], 256
    $region81: #{tpu_custom_call.1} parent=1 // pred_fallthru
      _
    // Predicated region
    $region82: #{tpu_custom_call.1} parent=1 // pred_check
      _
    $region83: #{tpu_custom_call.1} parent=1 // pred_check_branch
      %99 = sbr.rel (0) target = $region85
    $region84: #{tpu_custom_call.1} parent=1 // pred_region
      %100 = dma.done [#allocation6], 256
    $region85: #{tpu_custom_call.1} parent=1 // pred_fallthru
      _
    // Predicated region
    $region86: #{tpu_custom_call.1} parent=1 // pred_check
      _
    $region87: #{tpu_custom_call.1} parent=1 // pred_check_branch
      %102 = sbr.rel (0) target = $region89
    $region88: #{tpu_custom_call.1} parent=1 // pred_region
      %103 = dma.done [#allocation6], 256
    $region89: #{tpu_custom_call.1} parent=1 // pred_fallthru
      _
    %v104 = vld [vmem:[#allocation7] sm:$0xff]
    %v105 = vld [vmem:[#allocation7 + $0x8] sm:$0xff]
    %v106 = vld [vmem:[#allocation5] sm:$0xff]
    %v107 = vld [vmem:[#allocation5 + $0x8] sm:$0xff]
    %v108 = vld [vmem:[#allocation2] sm:$0xff]
    %v109 = vld [vmem:[#allocation2 + $0x8] sm:$0xff]
    %v110 = vld [vmem:[%s3] sm:$0xff]
    %v111 = vld [vmem:[%s3 + $0x8] sm:$0xff]
    %v112 = vld [vmem:[%s3 + $0x10] sm:$0xff]
    %v113 = vld [vmem:[%s3 + $0x18] sm:$0xff]
    %v114 = vld [vmem:[%s4] sm:$0x1]
    %v116 = vlaneseq
    %v117 = vshrl.u32 %v116, 7
    %v118 = vsub.s32 0, %v117
    %v119 = vrot.slane %v114, %v118
    %vm121 = vcmask 261120
    %v123 = vsel %vm121, %v104, 0
    %v126 = vsel %vm121, %v105, 0
    %128 = vmatprep.subr.mxu0 0.0
    %129 = vmatpush1.msra.mxu0 0.0
    %130 = vmatprep.subr.mxu0 0.0
    %131 = vmatpush1.msra.mxu0 0.0
    %132 = vmatprep.subr.mxu0 0.0
    %133 = vmatpush1.msra.mxu0 0.0
    %134 = vmatprep.subr.mxu0 0.0
    %135 = vmatpush1.msra.mxu0 0.0
    %136 = vmatprep.subr.mxu0 0.0
    %137 = vmatpush1.msra.mxu0 0.0
    %138 = vmatprep.subr.mxu0 0.0
    %139 = vmatpush1.msra.mxu0 0.0
    %140 = vmatprep.subr.mxu0 0.0
    %141 = vmatpush1.msra.mxu0 0.0
    %142 = vmatprep.subr.mxu0 0.0
    %143 = vmatpush1.msra.mxu0 0.0
    %144 = vmatprep.subr.mxu0 0.0
    %145 = vmatpush1.msra.mxu0 0.0
    %146 = vmatprep.subr.mxu0 0.0
    %147 = vmatpush1.msra.mxu0 0.0
    %148 = vmatprep.subr.mxu0 0.0
    %149 = vmatpush1.msra.mxu0 0.0
    %150 = vmatprep.subr.mxu0 0.0
    %151 = vmatpush1.msra.mxu0 0.0
    %152 = vmatprep.subr.mxu0 0.0
    %153 = vmatpush1.msra.mxu0 %v113
    %154 = vmatprep.subr.mxu0 0.0
    %155 = vmatpush1.msra.mxu0 %v112
    %156 = vmatprep.subr.mxu0 0.0
    %157 = vmatpush1.msra.mxu0 %v111
    %158 = vmatprep.subr.mxu0 0.0
    %159 = vmatpush1.msra.mxu0 %v110
    %160 = vmatprep.subr.mxu0 0.0
    %161 = vmatpush2.msra.mxu0 0.0
    %162 = vmatprep.subr.mxu0 0.0
    %163 = vmatpush2.msra.mxu0 0.0
    %164 = vmatprep.subr.mxu0 0.0
    %165 = vmatpush2.msra.mxu0 0.0
    %166 = vmatprep.subr.mxu0 0.0
    %167 = vmatpush2.msra.mxu0 0.0
    %168 = vmatprep.subr.mxu0 0.0
    %169 = vmatpush2.msra.mxu0 0.0
    %170 = vmatprep.subr.mxu0 0.0
    %171 = vmatpush2.msra.mxu0 0.0
    %172 = vmatprep.subr.mxu0 0.0
    %173 = vmatpush2.msra.mxu0 0.0
    %174 = vmatprep.subr.mxu0 0.0
    %175 = vmatpush2.msra.mxu0 0.0
    %176 = vmatprep.subr.mxu0 0.0
    %177 = vmatpush2.msra.mxu0 0.0
    %178 = vmatprep.subr.mxu0 0.0
    %179 = vmatpush2.msra.mxu0 0.0
    %180 = vmatprep.subr.mxu0 0.0
    %181 = vmatpush2.msra.mxu0 0.0
    %182 = vmatprep.subr.mxu0 0.0
    %183 = vmatpush2.msra.mxu0 0.0
    %184 = vmatprep.subr.mxu0 0.0
    %185 = vmatpush2.msra.mxu0 0.0
    %186 = vmatprep.subr.mxu0 0.0
    %187 = vmatpush2.msra.mxu0 0.0
    %188 = vmatprep.subr.mxu0 0.0
    %189 = vmatpush2.msra.mxu0 0.0
    %190 = vmatprep.subr.mxu0 0.0
    %191 = vmatpush2.msra.mxu0 0.0
    %192 = vmatprep.mubr.f32.mxu0 0.0
    %193 = vmatmul.mubr.f32.gmra.mxu0 %v123
    %v194 = vpop.f32.mrf.mxu0
    %v195 = vadd.f32 %v119, %v194
    %v196 = vpop.f32.mrf.mxu0
    %197 = vmatprep.mubr.f32.mxu0 0.0
    %198 = vmatmul.mubr.f32.gmra.mxu0 %v126
    %v199 = vpop.f32.mrf.mxu0
    %v200 = vadd.f32 %v119, %v199
    %v201 = vpop.f32.mrf.mxu0
    %202 = vdwg.mxu0
    %v203 = vmul.f32 %v195, 0.35355338
    %v204 = vmul.f32 %v200, 0.35355338
    %v205 = vld [vmem:[%s5] sm:$0xff]
    %v206 = vld [vmem:[%s5 + $0x8] sm:$0xff]
    %v207 = vld [vmem:[%s5 + $0x10] sm:$0xff]
    %v208 = vld [vmem:[%s5 + $0x18] sm:$0xff]
    %v209 = vld [vmem:[%s6] sm:$0x1]
    %v211 = vlaneseq
    %v212 = vshrl.u32 %v211, 7
    %v213 = vsub.s32 0, %v212
    %v214 = vrot.slane %v209, %v213
    %v217 = vsel %vm121, %v106, 0
    %v220 = vsel %vm121, %v107, 0
    %222 = vmatprep.subr.mxu0 0.0
    %223 = vmatpush1.msra.mxu0 0.0
    %224 = vmatprep.subr.mxu0 0.0
    %225 = vmatpush1.msra.mxu0 0.0
    %226 = vmatprep.subr.mxu0 0.0
    %227 = vmatpush1.msra.mxu0 0.0
    %228 = vmatprep.subr.mxu0 0.0
    %229 = vmatpush1.msra.mxu0 0.0
    %230 = vmatprep.subr.mxu0 0.0
    %231 = vmatpush1.msra.mxu0 0.0
    %232 = vmatprep.subr.mxu0 0.0
    %233 = vmatpush1.msra.mxu0 0.0
    %234 = vmatprep.subr.mxu0 0.0
    %235 = vmatpush1.msra.mxu0 0.0
    %236 = vmatprep.subr.mxu0 0.0
    %237 = vmatpush1.msra.mxu0 0.0
    %238 = vmatprep.subr.mxu0 0.0
    %239 = vmatpush1.msra.mxu0 0.0
    %240 = vmatprep.subr.mxu0 0.0
    %241 = vmatpush1.msra.mxu0 0.0
    %242 = vmatprep.subr.mxu0 0.0
    %243 = vmatpush1.msra.mxu0 0.0
    %244 = vmatprep.subr.mxu0 0.0
    %245 = vmatpush1.msra.mxu0 0.0
    %246 = vmatprep.subr.mxu0 0.0
    %247 = vmatpush1.msra.mxu0 %v208
    %248 = vmatprep.subr.mxu0 0.0
    %249 = vmatpush1.msra.mxu0 %v207
    %250 = vmatprep.subr.mxu0 0.0
    %251 = vmatpush1.msra.mxu0 %v206
    %252 = vmatprep.subr.mxu0 0.0
    %253 = vmatpush1.msra.mxu0 %v205
    %254 = vmatprep.subr.mxu0 0.0
    %255 = vmatpush2.msra.mxu0 0.0
    %256 = vmatprep.subr.mxu0 0.0
    %257 = vmatpush2.msra.mxu0 0.0
    %258 = vmatprep.subr.mxu0 0.0
    %259 = vmatpush2.msra.mxu0 0.0
    %260 = vmatprep.subr.mxu0 0.0
    %261 = vmatpush2.msra.mxu0 0.0
    %262 = vmatprep.subr.mxu0 0.0
    %263 = vmatpush2.msra.mxu0 0.0
    %264 = vmatprep.subr.mxu0 0.0
    %265 = vmatpush2.msra.mxu0 0.0
    %266 = vmatprep.subr.mxu0 0.0
    %267 = vmatpush2.msra.mxu0 0.0
    %268 = vmatprep.subr.mxu0 0.0
    %269 = vmatpush2.msra.mxu0 0.0
    %270 = vmatprep.subr.mxu0 0.0
    %271 = vmatpush2.msra.mxu0 0.0
    %272 = vmatprep.subr.mxu0 0.0
    %273 = vmatpush2.msra.mxu0 0.0
    %274 = vmatprep.subr.mxu0 0.0
    %275 = vmatpush2.msra.mxu0 0.0
    %276 = vmatprep.subr.mxu0 0.0
    %277 = vmatpush2.msra.mxu0 0.0
    %278 = vmatprep.subr.mxu0 0.0
    %279 = vmatpush2.msra.mxu0 0.0
    %280 = vmatprep.subr.mxu0 0.0
    %281 = vmatpush2.msra.mxu0 0.0
    %282 = vmatprep.subr.mxu0 0.0
    %283 = vmatpush2.msra.mxu0 0.0
    %284 = vmatprep.subr.mxu0 0.0
    %285 = vmatpush2.msra.mxu0 0.0
    %286 = vmatprep.mubr.f32.mxu0 0.0
    %287 = vmatmul.mubr.f32.gmra.mxu0 %v217
    %v288 = vpop.f32.mrf.mxu0
    %v289 = vadd.f32 %v214, %v288
    %v290 = vpop.f32.mrf.mxu0
    %291 = vmatprep.mubr.f32.mxu0 0.0
    %292 = vmatmul.mubr.f32.gmra.mxu0 %v220
    %v293 = vpop.f32.mrf.mxu0
    %v294 = vadd.f32 %v214, %v293
    %v295 = vpop.f32.mrf.mxu0
    %296 = vdwg.mxu0
    %v297 = vld [vmem:[%s7] sm:$0xff]
    %v298 = vld [vmem:[%s7 + $0x8] sm:$0xff]
    %v299 = vld [vmem:[%s7 + $0x10] sm:$0xff]
    %v300 = vld [vmem:[%s7 + $0x18] sm:$0xff]
    %v301 = vld [vmem:[%s8] sm:$0x1]
    %v303 = vlaneseq
    %v304 = vshrl.u32 %v303, 7
    %v305 = vsub.s32 0, %v304
    %v306 = vrot.slane %v301, %v305
    %v309 = vsel %vm121, %v108, 0
    %v312 = vsel %vm121, %v109, 0
    %314 = vmatprep.subr.mxu0 0.0
    %315 = vmatpush1.msra.mxu0 0.0
    %316 = vmatprep.subr.mxu0 0.0
    %317 = vmatpush1.msra.mxu0 0.0
    %318 = vmatprep.subr.mxu0 0.0
    %319 = vmatpush1.msra.mxu0 0.0
    %320 = vmatprep.subr.mxu0 0.0
    %321 = vmatpush1.msra.mxu0 0.0
    %322 = vmatprep.subr.mxu0 0.0
    %323 = vmatpush1.msra.mxu0 0.0
    %324 = vmatprep.subr.mxu0 0.0
    %325 = vmatpush1.msra.mxu0 0.0
    %326 = vmatprep.subr.mxu0 0.0
    %327 = vmatpush1.msra.mxu0 0.0
    %328 = vmatprep.subr.mxu0 0.0
    %329 = vmatpush1.msra.mxu0 0.0
    %330 = vmatprep.subr.mxu0 0.0
    %331 = vmatpush1.msra.mxu0 0.0
    %332 = vmatprep.subr.mxu0 0.0
    %333 = vmatpush1.msra.mxu0 0.0
    %334 = vmatprep.subr.mxu0 0.0
    %335 = vmatpush1.msra.mxu0 0.0
    %336 = vmatprep.subr.mxu0 0.0
    %337 = vmatpush1.msra.mxu0 0.0
    %338 = vmatprep.subr.mxu0 0.0
    %339 = vmatpush1.msra.mxu0 %v300
    %340 = vmatprep.subr.mxu0 0.0
    %341 = vmatpush1.msra.mxu0 %v299
    %342 = vmatprep.subr.mxu0 0.0
    %343 = vmatpush1.msra.mxu0 %v298
    %344 = vmatprep.subr.mxu0 0.0
    %345 = vmatpush1.msra.mxu0 %v297
    %346 = vmatprep.subr.mxu0 0.0
    %347 = vmatpush2.msra.mxu0 0.0
    %348 = vmatprep.subr.mxu0 0.0
    %349 = vmatpush2.msra.mxu0 0.0
    %350 = vmatprep.subr.mxu0 0.0
    %351 = vmatpush2.msra.mxu0 0.0
    %352 = vmatprep.subr.mxu0 0.0
    %353 = vmatpush2.msra.mxu0 0.0
    %354 = vmatprep.subr.mxu0 0.0
    %355 = vmatpush2.msra.mxu0 0.0
    %356 = vmatprep.subr.mxu0 0.0
    %357 = vmatpush2.msra.mxu0 0.0
    %358 = vmatprep.subr.mxu0 0.0
    %359 = vmatpush2.msra.mxu0 0.0
    %360 = vmatprep.subr.mxu0 0.0
    %361 = vmatpush2.msra.mxu0 0.0
    %362 = vmatprep.subr.mxu0 0.0
    %363 = vmatpush2.msra.mxu0 0.0
    %364 = vmatprep.subr.mxu0 0.0
    %365 = vmatpush2.msra.mxu0 0.0
    %366 = vmatprep.subr.mxu0 0.0
    %367 = vmatpush2.msra.mxu0 0.0
    %368 = vmatprep.subr.mxu0 0.0
    %369 = vmatpush2.msra.mxu0 0.0
    %370 = vmatprep.subr.mxu0 0.0
    %371 = vmatpush2.msra.mxu0 0.0
    %372 = vmatprep.subr.mxu0 0.0
    %373 = vmatpush2.msra.mxu0 0.0
    %374 = vmatprep.subr.mxu0 0.0
    %375 = vmatpush2.msra.mxu0 0.0
    %376 = vmatprep.subr.mxu0 0.0
    %377 = vmatpush2.msra.mxu0 0.0
    %378 = vmatprep.mubr.f32.mxu0 0.0
    %379 = vmatmul.mubr.f32.gmra.mxu0 %v309
    %v380 = vpop.f32.mrf.mxu0
    %v381 = vadd.f32 %v306, %v380
    %v382 = vpop.f32.mrf.mxu0
    %383 = vmatprep.mubr.f32.mxu0 0.0
    %384 = vmatmul.mubr.f32.gmra.mxu0 %v312
    %v385 = vpop.f32.mrf.mxu0
    %v386 = vadd.f32 %v306, %v385
    %v387 = vpop.f32.mrf.mxu0
    %388 = vdwg.mxu0
    %vm389 = vcmask 64512
    %v391 = vsel %vm389, %v203, 0
    %v394 = vsel %vm389, %v289, 0
    %396 = vmatprep.subr.mxu0 0.0
    %397 = vmatpush1.xpose.msra.mxu0 0.0
    %398 = vmatprep.subr.mxu0 0.0
    %399 = vmatpush1.xpose.msra.mxu0 0.0
    %400 = vmatprep.subr.mxu0 0.0
    %401 = vmatpush1.xpose.msra.mxu0 0.0
    %402 = vmatprep.subr.mxu0 0.0
    %403 = vmatpush1.xpose.msra.mxu0 0.0
    %404 = vmatprep.subr.mxu0 0.0
    %405 = vmatpush1.xpose.msra.mxu0 0.0
    %406 = vmatprep.subr.mxu0 0.0
    %407 = vmatpush1.xpose.msra.mxu0 0.0
    %408 = vmatprep.subr.mxu0 0.0
    %409 = vmatpush1.xpose.msra.mxu0 0.0
    %410 = vmatprep.subr.mxu0 0.0
    %411 = vmatpush1.xpose.msra.mxu0 0.0
    %412 = vmatprep.subr.mxu0 0.0
    %413 = vmatpush1.xpose.msra.mxu0 0.0
    %414 = vmatprep.subr.mxu0 0.0
    %415 = vmatpush1.xpose.msra.mxu0 0.0
    %416 = vmatprep.subr.mxu0 0.0
    %417 = vmatpush1.xpose.msra.mxu0 0.0
    %418 = vmatprep.subr.mxu0 0.0
    %419 = vmatpush1.xpose.msra.mxu0 0.0
    %420 = vmatprep.subr.mxu0 0.0
    %421 = vmatpush1.xpose.msra.mxu0 0.0
    %422 = vmatprep.subr.mxu0 0.0
    %423 = vmatpush1.xpose.msra.mxu0 0.0
    %424 = vmatprep.subr.mxu0 0.0
    %425 = vmatpush1.xpose.msra.mxu0 0.0
    %426 = vmatprep.subr.mxu0 0.0
    %427 = vmatpush1.xpose.msra.mxu0 %v394
    %428 = vmatprep.subr.mxu0 0.0
    %429 = vmatpush2.xpose.msra.mxu0 0.0
    %430 = vmatprep.subr.mxu0 0.0
    %431 = vmatpush2.xpose.msra.mxu0 0.0
    %432 = vmatprep.subr.mxu0 0.0
    %433 = vmatpush2.xpose.msra.mxu0 0.0
    %434 = vmatprep.subr.mxu0 0.0
    %435 = vmatpush2.xpose.msra.mxu0 0.0
    %436 = vmatprep.subr.mxu0 0.0
    %437 = vmatpush2.xpose.msra.mxu0 0.0
    %438 = vmatprep.subr.mxu0 0.0
    %439 = vmatpush2.xpose.msra.mxu0 0.0
    %440 = vmatprep.subr.mxu0 0.0
    %441 = vmatpush2.xpose.msra.mxu0 0.0
    %442 = vmatprep.subr.mxu0 0.0
    %443 = vmatpush2.xpose.msra.mxu0 0.0
    %444 = vmatprep.subr.mxu0 0.0
    %445 = vmatpush2.xpose.msra.mxu0 0.0
    %446 = vmatprep.subr.mxu0 0.0
    %447 = vmatpush2.xpose.msra.mxu0 0.0
    %448 = vmatprep.subr.mxu0 0.0
    %449 = vmatpush2.xpose.msra.mxu0 0.0
    %450 = vmatprep.subr.mxu0 0.0
    %451 = vmatpush2.xpose.msra.mxu0 0.0
    %452 = vmatprep.subr.mxu0 0.0
    %453 = vmatpush2.xpose.msra.mxu0 0.0
    %454 = vmatprep.subr.mxu0 0.0
    %455 = vmatpush2.xpose.msra.mxu0 0.0
    %456 = vmatprep.subr.mxu0 0.0
    %457 = vmatpush2.xpose.msra.mxu0 0.0
    %458 = vmatprep.subr.mxu0 0.0
    %459 = vmatpush2.xpose.msra.mxu0 0.0
    %460 = vmatprep.mubr.f32.mxu0 0.0
    %461 = vmatmul.mubr.f32.gmra.mxu0 %v391
    %v462 = vpop.f32.mrf.mxu0
    %v463 = vadd.f32 0.0, %v462
    %v464 = vpop.f32.mrf.mxu0
    %465 = vdwg.mxu0
    %v467 = vsel %vm389, %v204, 0
    %v470 = vsel %vm389, %v294, 0
    %472 = vmatprep.subr.mxu0 0.0
    %473 = vmatpush1.xpose.msra.mxu0 0.0
    %474 = vmatprep.subr.mxu0 0.0
    %475 = vmatpush1.xpose.msra.mxu0 0.0
    %476 = vmatprep.subr.mxu0 0.0
    %477 = vmatpush1.xpose.msra.mxu0 0.0
    %478 = vmatprep.subr.mxu0 0.0
    %479 = vmatpush1.xpose.msra.mxu0 0.0
    %480 = vmatprep.subr.mxu0 0.0
    %481 = vmatpush1.xpose.msra.mxu0 0.0
    %482 = vmatprep.subr.mxu0 0.0
    %483 = vmatpush1.xpose.msra.mxu0 0.0
    %484 = vmatprep.subr.mxu0 0.0
    %485 = vmatpush1.xpose.msra.mxu0 0.0
    %486 = vmatprep.subr.mxu0 0.0
    %487 = vmatpush1.xpose.msra.mxu0 0.0
    %488 = vmatprep.subr.mxu0 0.0
    %489 = vmatpush1.xpose.msra.mxu0 0.0
    %490 = vmatprep.subr.mxu0 0.0
    %491 = vmatpush1.xpose.msra.mxu0 0.0
    %492 = vmatprep.subr.mxu0 0.0
    %493 = vmatpush1.xpose.msra.mxu0 0.0
    %494 = vmatprep.subr.mxu0 0.0
    %495 = vmatpush1.xpose.msra.mxu0 0.0
    %496 = vmatprep.subr.mxu0 0.0
    %497 = vmatpush1.xpose.msra.mxu0 0.0
    %498 = vmatprep.subr.mxu0 0.0
    %499 = vmatpush1.xpose.msra.mxu0 0.0
    %500 = vmatprep.subr.mxu0 0.0
    %501 = vmatpush1.xpose.msra.mxu0 0.0
    %502 = vmatprep.subr.mxu0 0.0
    %503 = vmatpush1.xpose.msra.mxu0 %v470
    %504 = vmatprep.subr.mxu0 0.0
    %505 = vmatpush2.xpose.msra.mxu0 0.0
    %506 = vmatprep.subr.mxu0 0.0
    %507 = vmatpush2.xpose.msra.mxu0 0.0
    %508 = vmatprep.subr.mxu0 0.0
    %509 = vmatpush2.xpose.msra.mxu0 0.0
    %510 = vmatprep.subr.mxu0 0.0
    %511 = vmatpush2.xpose.msra.mxu0 0.0
    %512 = vmatprep.subr.mxu0 0.0
    %513 = vmatpush2.xpose.msra.mxu0 0.0
    %514 = vmatprep.subr.mxu0 0.0
    %515 = vmatpush2.xpose.msra.mxu0 0.0
    %516 = vmatprep.subr.mxu0 0.0
    %517 = vmatpush2.xpose.msra.mxu0 0.0
    %518 = vmatprep.subr.mxu0 0.0
    %519 = vmatpush2.xpose.msra.mxu0 0.0
    %520 = vmatprep.subr.mxu0 0.0
    %521 = vmatpush2.xpose.msra.mxu0 0.0
    %522 = vmatprep.subr.mxu0 0.0
    %523 = vmatpush2.xpose.msra.mxu0 0.0
    %524 = vmatprep.subr.mxu0 0.0
    %525 = vmatpush2.xpose.msra.mxu0 0.0
    %526 = vmatprep.subr.mxu0 0.0
    %527 = vmatpush2.xpose.msra.mxu0 0.0
    %528 = vmatprep.subr.mxu0 0.0
    %529 = vmatpush2.xpose.msra.mxu0 0.0
    %530 = vmatprep.subr.mxu0 0.0
    %531 = vmatpush2.xpose.msra.mxu0 0.0
    %532 = vmatprep.subr.mxu0 0.0
    %533 = vmatpush2.xpose.msra.mxu0 0.0
    %534 = vmatprep.subr.mxu0 0.0
    %535 = vmatpush2.xpose.msra.mxu0 0.0
    %536 = vmatprep.mubr.f32.mxu0 0.0
    %537 = vmatmul.mubr.f32.gmra.mxu0 %v467
    %v538 = vpop.f32.mrf.mxu0
    %v539 = vadd.f32 0.0, %v538
    %v540 = vpop.f32.mrf.mxu0
    %541 = vdwg.mxu0
    %v542 = vsel %vm389, %v463, -inf
    %543 = vmax.xlane.f32.xlu0 %v542
    %v544 = vpop.xlane.xlu0 %543
    %v545 = vsel %vm389, %v539, -inf
    %546 = vmax.xlane.f32.xlu0 %v545
    %v547 = vpop.xlane.xlu0 %546
    %v548 = vsub.f32 %v463, %v544
    %v549 = vsub.f32 %v539, %v547
    %v550 = vmul.f32 %v548, 1.442695
    %v551 = vpow.pop %v550
    %v552 = vmul.f32 %v549, 1.442695
    %v553 = vpow.pop %v552
    %v554 = vsel %vm389, %v551, 0.0
    %555 = vadd.xlane.f32.xlu0 %v554
    %v556 = vpop.xlane.xlu0 %555
    %v557 = vsel %vm389, %v553, 0.0
    %558 = vadd.xlane.f32.xlu0 %v557
    %v559 = vpop.xlane.xlu0 %558
    %v560 = vrcp.pop %v556
    %v561 = vrcp.pop %v559
    %v562 = vmul.f32 %v551, %v560
    %v563 = vmul.f32 %v553, %v561
    %v565 = vsel %vm389, %v562, 0
    %567 = vmatprep.subr.mxu0 0.0
    %568 = vmatpush1.msra.mxu0 0.0
    %569 = vmatprep.subr.mxu0 0.0
    %570 = vmatpush1.msra.mxu0 0.0
    %571 = vmatprep.subr.mxu0 0.0
    %572 = vmatpush1.msra.mxu0 0.0
    %573 = vmatprep.subr.mxu0 0.0
    %574 = vmatpush1.msra.mxu0 0.0
    %575 = vmatprep.subr.mxu0 0.0
    %576 = vmatpush1.msra.mxu0 0.0
    %577 = vmatprep.subr.mxu0 0.0
    %578 = vmatpush1.msra.mxu0 0.0
    %579 = vmatprep.subr.mxu0 0.0
    %580 = vmatpush1.msra.mxu0 0.0
    %581 = vmatprep.subr.mxu0 0.0
    %582 = vmatpush1.msra.mxu0 0.0
    %583 = vmatprep.subr.mxu0 0.0
    %584 = vmatpush1.msra.mxu0 0.0
    %585 = vmatprep.subr.mxu0 0.0
    %586 = vmatpush1.msra.mxu0 0.0
    %587 = vmatprep.subr.mxu0 0.0
    %588 = vmatpush1.msra.mxu0 0.0
    %589 = vmatprep.subr.mxu0 0.0
    %590 = vmatpush1.msra.mxu0 0.0
    %591 = vmatprep.subr.mxu0 0.0
    %592 = vmatpush1.msra.mxu0 0.0
    %593 = vmatprep.subr.mxu0 0.0
    %594 = vmatpush1.msra.mxu0 0.0
    %595 = vmatprep.subr.mxu0 0.0
    %596 = vmatpush1.msra.mxu0 0.0
    %597 = vmatprep.subr.mxu0 0.0
    %598 = vmatpush1.msra.mxu0 %v381
    %599 = vmatprep.subr.mxu0 0.0
    %600 = vmatpush2.msra.mxu0 0.0
    %601 = vmatprep.subr.mxu0 0.0
    %602 = vmatpush2.msra.mxu0 0.0
    %603 = vmatprep.subr.mxu0 0.0
    %604 = vmatpush2.msra.mxu0 0.0
    %605 = vmatprep.subr.mxu0 0.0
    %606 = vmatpush2.msra.mxu0 0.0
    %607 = vmatprep.subr.mxu0 0.0
    %608 = vmatpush2.msra.mxu0 0.0
    %609 = vmatprep.subr.mxu0 0.0
    %610 = vmatpush2.msra.mxu0 0.0
    %611 = vmatprep.subr.mxu0 0.0
    %612 = vmatpush2.msra.mxu0 0.0
    %613 = vmatprep.subr.mxu0 0.0
    %614 = vmatpush2.msra.mxu0 0.0
    %615 = vmatprep.subr.mxu0 0.0
    %616 = vmatpush2.msra.mxu0 0.0
    %617 = vmatprep.subr.mxu0 0.0
    %618 = vmatpush2.msra.mxu0 0.0
    %619 = vmatprep.subr.mxu0 0.0
    %620 = vmatpush2.msra.mxu0 0.0
    %621 = vmatprep.subr.mxu0 0.0
    %622 = vmatpush2.msra.mxu0 0.0
    %623 = vmatprep.subr.mxu0 0.0
    %624 = vmatpush2.msra.mxu0 0.0
    %625 = vmatprep.subr.mxu0 0.0
    %626 = vmatpush2.msra.mxu0 0.0
    %627 = vmatprep.subr.mxu0 0.0
    %628 = vmatpush2.msra.mxu0 0.0
    %629 = vmatprep.subr.mxu0 0.0
    %630 = vmatpush2.msra.mxu0 0.0
    %631 = vmatprep.mubr.f32.mxu0 0.0
    %632 = vmatmul.mubr.f32.gmra.mxu0 %v565
    %v633 = vpop.f32.mrf.mxu0
    %v634 = vadd.f32 0.0, %v633
    %v635 = vpop.f32.mrf.mxu0
    %636 = vdwg.mxu0
    %v638 = vsel %vm389, %v563, 0
    %640 = vmatprep.subr.mxu0 0.0
    %641 = vmatpush1.msra.mxu0 0.0
    %642 = vmatprep.subr.mxu0 0.0
    %643 = vmatpush1.msra.mxu0 0.0
    %644 = vmatprep.subr.mxu0 0.0
    %645 = vmatpush1.msra.mxu0 0.0
    %646 = vmatprep.subr.mxu0 0.0
    %647 = vmatpush1.msra.mxu0 0.0
    %648 = vmatprep.subr.mxu0 0.0
    %649 = vmatpush1.msra.mxu0 0.0
    %650 = vmatprep.subr.mxu0 0.0
    %651 = vmatpush1.msra.mxu0 0.0
    %652 = vmatprep.subr.mxu0 0.0
    %653 = vmatpush1.msra.mxu0 0.0
    %654 = vmatprep.subr.mxu0 0.0
    %655 = vmatpush1.msra.mxu0 0.0
    %656 = vmatprep.subr.mxu0 0.0
    %657 = vmatpush1.msra.mxu0 0.0
    %658 = vmatprep.subr.mxu0 0.0
    %659 = vmatpush1.msra.mxu0 0.0
    %660 = vmatprep.subr.mxu0 0.0
    %661 = vmatpush1.msra.mxu0 0.0
    %662 = vmatprep.subr.mxu0 0.0
    %663 = vmatpush1.msra.mxu0 0.0
    %664 = vmatprep.subr.mxu0 0.0
    %665 = vmatpush1.msra.mxu0 0.0
    %666 = vmatprep.subr.mxu0 0.0
    %667 = vmatpush1.msra.mxu0 0.0
    %668 = vmatprep.subr.mxu0 0.0
    %669 = vmatpush1.msra.mxu0 0.0
    %670 = vmatprep.subr.mxu0 0.0
    %671 = vmatpush1.msra.mxu0 %v386
    %672 = vmatprep.subr.mxu0 0.0
    %673 = vmatpush2.msra.mxu0 0.0
    %674 = vmatprep.subr.mxu0 0.0
    %675 = vmatpush2.msra.mxu0 0.0
    %676 = vmatprep.subr.mxu0 0.0
    %677 = vmatpush2.msra.mxu0 0.0
    %678 = vmatprep.subr.mxu0 0.0
    %679 = vmatpush2.msra.mxu0 0.0
    %680 = vmatprep.subr.mxu0 0.0
    %681 = vmatpush2.msra.mxu0 0.0
    %682 = vmatprep.subr.mxu0 0.0
    %683 = vmatpush2.msra.mxu0 0.0
    %684 = vmatprep.subr.mxu0 0.0
    %685 = vmatpush2.msra.mxu0 0.0
    %686 = vmatprep.subr.mxu0 0.0
    %687 = vmatpush2.msra.mxu0 0.0
    %688 = vmatprep.subr.mxu0 0.0
    %689 = vmatpush2.msra.mxu0 0.0
    %690 = vmatprep.subr.mxu0 0.0
    %691 = vmatpush2.msra.mxu0 0.0
    %692 = vmatprep.subr.mxu0 0.0
    %693 = vmatpush2.msra.mxu0 0.0
    %694 = vmatprep.subr.mxu0 0.0
    %695 = vmatpush2.msra.mxu0 0.0
    %696 = vmatprep.subr.mxu0 0.0
    %697 = vmatpush2.msra.mxu0 0.0
    %698 = vmatprep.subr.mxu0 0.0
    %699 = vmatpush2.msra.mxu0 0.0
    %700 = vmatprep.subr.mxu0 0.0
    %701 = vmatpush2.msra.mxu0 0.0
    %702 = vmatprep.subr.mxu0 0.0
    %703 = vmatpush2.msra.mxu0 0.0
    %704 = vmatprep.mubr.f32.mxu0 0.0
    %705 = vmatmul.mubr.f32.gmra.mxu0 %v638
    %v706 = vpop.f32.mrf.mxu0
    %v707 = vadd.f32 0.0, %v706
    %v708 = vpop.f32.mrf.mxu0
    %709 = vdwg.mxu0
    %v710 = vld [vmem:[%s9] sm:$0xff]
    %711 = vrot.lane.b32.xlu0 %v203, 120
    %v712 = vpop.permute.xlu0 %711
    %713 = vrot.lane.b32.xlu0 %v289, 120
    %v714 = vpop.permute.xlu0 %713
    %v715 = vsel %vm389, %v712, 0
    %v717 = vsel %vm389, %v714, 0
    %719 = vmatprep.subr.mxu0 0.0
    %720 = vmatpush1.xpose.msra.mxu0 0.0
    %721 = vmatprep.subr.mxu0 0.0
    %722 = vmatpush1.xpose.msra.mxu0 0.0
    %723 = vmatprep.subr.mxu0 0.0
    %724 = vmatpush1.xpose.msra.mxu0 0.0
    %725 = vmatprep.subr.mxu0 0.0
    %726 = vmatpush1.xpose.msra.mxu0 0.0
    %727 = vmatprep.subr.mxu0 0.0
    %728 = vmatpush1.xpose.msra.mxu0 0.0
    %729 = vmatprep.subr.mxu0 0.0
    %730 = vmatpush1.xpose.msra.mxu0 0.0
    %731 = vmatprep.subr.mxu0 0.0
    %732 = vmatpush1.xpose.msra.mxu0 0.0
    %733 = vmatprep.subr.mxu0 0.0
    %734 = vmatpush1.xpose.msra.mxu0 0.0
    %735 = vmatprep.subr.mxu0 0.0
    %736 = vmatpush1.xpose.msra.mxu0 0.0
    %737 = vmatprep.subr.mxu0 0.0
    %738 = vmatpush1.xpose.msra.mxu0 0.0
    %739 = vmatprep.subr.mxu0 0.0
    %740 = vmatpush1.xpose.msra.mxu0 0.0
    %741 = vmatprep.subr.mxu0 0.0
    %742 = vmatpush1.xpose.msra.mxu0 0.0
    %743 = vmatprep.subr.mxu0 0.0
    %744 = vmatpush1.xpose.msra.mxu0 0.0
    %745 = vmatprep.subr.mxu0 0.0
    %746 = vmatpush1.xpose.msra.mxu0 0.0
    %747 = vmatprep.subr.mxu0 0.0
    %748 = vmatpush1.xpose.msra.mxu0 0.0
    %749 = vmatprep.subr.mxu0 0.0
    %750 = vmatpush1.xpose.msra.mxu0 %v717
    %751 = vmatprep.subr.mxu0 0.0
    %752 = vmatpush2.xpose.msra.mxu0 0.0
    %753 = vmatprep.subr.mxu0 0.0
    %754 = vmatpush2.xpose.msra.mxu0 0.0
    %755 = vmatprep.subr.mxu0 0.0
    %756 = vmatpush2.xpose.msra.mxu0 0.0
    %757 = vmatprep.subr.mxu0 0.0
    %758 = vmatpush2.xpose.msra.mxu0 0.0
    %759 = vmatprep.subr.mxu0 0.0
    %760 = vmatpush2.xpose.msra.mxu0 0.0
    %761 = vmatprep.subr.mxu0 0.0
    %762 = vmatpush2.xpose.msra.mxu0 0.0
    %763 = vmatprep.subr.mxu0 0.0
    %764 = vmatpush2.xpose.msra.mxu0 0.0
    %765 = vmatprep.subr.mxu0 0.0
    %766 = vmatpush2.xpose.msra.mxu0 0.0
    %767 = vmatprep.subr.mxu0 0.0
    %768 = vmatpush2.xpose.msra.mxu0 0.0
    %769 = vmatprep.subr.mxu0 0.0
    %770 = vmatpush2.xpose.msra.mxu0 0.0
    %771 = vmatprep.subr.mxu0 0.0
    %772 = vmatpush2.xpose.msra.mxu0 0.0
    %773 = vmatprep.subr.mxu0 0.0
    %774 = vmatpush2.xpose.msra.mxu0 0.0
    %775 = vmatprep.subr.mxu0 0.0
    %776 = vmatpush2.xpose.msra.mxu0 0.0
    %777 = vmatprep.subr.mxu0 0.0
    %778 = vmatpush2.xpose.msra.mxu0 0.0
    %779 = vmatprep.subr.mxu0 0.0
    %780 = vmatpush2.xpose.msra.mxu0 0.0
    %781 = vmatprep.subr.mxu0 0.0
    %782 = vmatpush2.xpose.msra.mxu0 0.0
    %783 = vmatprep.mubr.f32.mxu0 0.0
    %784 = vmatmul.mubr.f32.gmra.mxu0 %v715
    %v785 = vpop.f32.mrf.mxu0
    %v786 = vadd.f32 0.0, %v785
    %v787 = vpop.f32.mrf.mxu0
    %788 = vdwg.mxu0
    %789 = vrot.lane.b32.xlu0 %v204, 120
    %v790 = vpop.permute.xlu0 %789
    %791 = vrot.lane.b32.xlu0 %v294, 120
    %v792 = vpop.permute.xlu0 %791
    %v793 = vsel %vm389, %v790, 0
    %v795 = vsel %vm389, %v792, 0
    %797 = vmatprep.subr.mxu0 0.0
    %798 = vmatpush1.xpose.msra.mxu0 0.0
    %799 = vmatprep.subr.mxu0 0.0
    %800 = vmatpush1.xpose.msra.mxu0 0.0
    %801 = vmatprep.subr.mxu0 0.0
    %802 = vmatpush1.xpose.msra.mxu0 0.0
    %803 = vmatprep.subr.mxu0 0.0
    %804 = vmatpush1.xpose.msra.mxu0 0.0
    %805 = vmatprep.subr.mxu0 0.0
    %806 = vmatpush1.xpose.msra.mxu0 0.0
    %807 = vmatprep.subr.mxu0 0.0
    %808 = vmatpush1.xpose.msra.mxu0 0.0
    %809 = vmatprep.subr.mxu0 0.0
    %810 = vmatpush1.xpose.msra.mxu0 0.0
    %811 = vmatprep.subr.mxu0 0.0
    %812 = vmatpush1.xpose.msra.mxu0 0.0
    %813 = vmatprep.subr.mxu0 0.0
    %814 = vmatpush1.xpose.msra.mxu0 0.0
    %815 = vmatprep.subr.mxu0 0.0
    %816 = vmatpush1.xpose.msra.mxu0 0.0
    %817 = vmatprep.subr.mxu0 0.0
    %818 = vmatpush1.xpose.msra.mxu0 0.0
    %819 = vmatprep.subr.mxu0 0.0
    %820 = vmatpush1.xpose.msra.mxu0 0.0
    %821 = vmatprep.subr.mxu0 0.0
    %822 = vmatpush1.xpose.msra.mxu0 0.0
    %823 = vmatprep.subr.mxu0 0.0
    %824 = vmatpush1.xpose.msra.mxu0 0.0
    %825 = vmatprep.subr.mxu0 0.0
    %826 = vmatpush1.xpose.msra.mxu0 0.0
    %827 = vmatprep.subr.mxu0 0.0
    %828 = vmatpush1.xpose.msra.mxu0 %v795
    %829 = vmatprep.subr.mxu0 0.0
    %830 = vmatpush2.xpose.msra.mxu0 0.0
    %831 = vmatprep.subr.mxu0 0.0
    %832 = vmatpush2.xpose.msra.mxu0 0.0
    %833 = vmatprep.subr.mxu0 0.0
    %834 = vmatpush2.xpose.msra.mxu0 0.0
    %835 = vmatprep.subr.mxu0 0.0
    %836 = vmatpush2.xpose.msra.mxu0 0.0
    %837 = vmatprep.subr.mxu0 0.0
    %838 = vmatpush2.xpose.msra.mxu0 0.0
    %839 = vmatprep.subr.mxu0 0.0
    %840 = vmatpush2.xpose.msra.mxu0 0.0
    %841 = vmatprep.subr.mxu0 0.0
    %842 = vmatpush2.xpose.msra.mxu0 0.0
    %843 = vmatprep.subr.mxu0 0.0
    %844 = vmatpush2.xpose.msra.mxu0 0.0
    %845 = vmatprep.subr.mxu0 0.0
    %846 = vmatpush2.xpose.msra.mxu0 0.0
    %847 = vmatprep.subr.mxu0 0.0
    %848 = vmatpush2.xpose.msra.mxu0 0.0
    %849 = vmatprep.subr.mxu0 0.0
    %850 = vmatpush2.xpose.msra.mxu0 0.0
    %851 = vmatprep.subr.mxu0 0.0
    %852 = vmatpush2.xpose.msra.mxu0 0.0
    %853 = vmatprep.subr.mxu0 0.0
    %854 = vmatpush2.xpose.msra.mxu0 0.0
    %855 = vmatprep.subr.mxu0 0.0
    %856 = vmatpush2.xpose.msra.mxu0 0.0
    %857 = vmatprep.subr.mxu0 0.0
    %858 = vmatpush2.xpose.msra.mxu0 0.0
    %859 = vmatprep.subr.mxu0 0.0
    %860 = vmatpush2.xpose.msra.mxu0 0.0
    %861 = vmatprep.mubr.f32.mxu0 0.0
    %862 = vmatmul.mubr.f32.gmra.mxu0 %v793
    %v863 = vpop.f32.mrf.mxu0
    %v864 = vadd.f32 0.0, %v863
    %v865 = vpop.f32.mrf.mxu0
    %866 = vdwg.mxu0
    %v867 = vsel %vm389, %v786, -inf
    %868 = vmax.xlane.f32.xlu0 %v867
    %v869 = vpop.xlane.xlu0 %868
    %v870 = vsel %vm389, %v864, -inf
    %871 = vmax.xlane.f32.xlu0 %v870
    %v872 = vpop.xlane.xlu0 %871
    %v873 = vsub.f32 %v786, %v869
    %v874 = vsub.f32 %v864, %v872
    %v875 = vmul.f32 %v873, 1.442695
    %v876 = vpow.pop %v875
    %v877 = vmul.f32 %v874, 1.442695
    %v878 = vpow.pop %v877
    %v879 = vsel %vm389, %v876, 0.0
    %880 = vadd.xlane.f32.xlu0 %v879
    %v881 = vpop.xlane.xlu0 %880
    %v882 = vsel %vm389, %v878, 0.0
    %883 = vadd.xlane.f32.xlu0 %v882
    %v884 = vpop.xlane.xlu0 %883
    %v885 = vrcp.pop %v881
    %v886 = vrcp.pop %v884
    %v887 = vmul.f32 %v876, %v885
    %v888 = vmul.f32 %v878, %v886
    %890 = vrot.lane.b32.xlu0 %v381, 120
    %v891 = vpop.permute.xlu0 %890
    %v894 = vsel %vm389, %v887, 0
    %896 = vmatprep.subr.mxu0 0.0
    %897 = vmatpush1.msra.mxu0 0.0
    %898 = vmatprep.subr.mxu0 0.0
    %899 = vmatpush1.msra.mxu0 0.0
    %900 = vmatprep.subr.mxu0 0.0
    %901 = vmatpush1.msra.mxu0 0.0
    %902 = vmatprep.subr.mxu0 0.0
    %903 = vmatpush1.msra.mxu0 0.0
    %904 = vmatprep.subr.mxu0 0.0
    %905 = vmatpush1.msra.mxu0 0.0
    %906 = vmatprep.subr.mxu0 0.0
    %907 = vmatpush1.msra.mxu0 0.0
    %908 = vmatprep.subr.mxu0 0.0
    %909 = vmatpush1.msra.mxu0 0.0
    %910 = vmatprep.subr.mxu0 0.0
    %911 = vmatpush1.msra.mxu0 0.0
    %912 = vmatprep.subr.mxu0 0.0
    %913 = vmatpush1.msra.mxu0 0.0
    %914 = vmatprep.subr.mxu0 0.0
    %915 = vmatpush1.msra.mxu0 0.0
    %916 = vmatprep.subr.mxu0 0.0
    %917 = vmatpush1.msra.mxu0 0.0
    %918 = vmatprep.subr.mxu0 0.0
    %919 = vmatpush1.msra.mxu0 0.0
    %920 = vmatprep.subr.mxu0 0.0
    %921 = vmatpush1.msra.mxu0 0.0
    %922 = vmatprep.subr.mxu0 0.0
    %923 = vmatpush1.msra.mxu0 0.0
    %924 = vmatprep.subr.mxu0 0.0
    %925 = vmatpush1.msra.mxu0 0.0
    %926 = vmatprep.subr.mxu0 0.0
    %927 = vmatpush1.msra.mxu0 %v891
    %928 = vmatprep.subr.mxu0 0.0
    %929 = vmatpush2.msra.mxu0 0.0
    %930 = vmatprep.subr.mxu0 0.0
    %931 = vmatpush2.msra.mxu0 0.0
    %932 = vmatprep.subr.mxu0 0.0
    %933 = vmatpush2.msra.mxu0 0.0
    %934 = vmatprep.subr.mxu0 0.0
    %935 = vmatpush2.msra.mxu0 0.0
    %936 = vmatprep.subr.mxu0 0.0
    %937 = vmatpush2.msra.mxu0 0.0
    %938 = vmatprep.subr.mxu0 0.0
    %939 = vmatpush2.msra.mxu0 0.0
    %940 = vmatprep.subr.mxu0 0.0
    %941 = vmatpush2.msra.mxu0 0.0
    %942 = vmatprep.subr.mxu0 0.0
    %943 = vmatpush2.msra.mxu0 0.0
    %944 = vmatprep.subr.mxu0 0.0
    %945 = vmatpush2.msra.mxu0 0.0
    %946 = vmatprep.subr.mxu0 0.0
    %947 = vmatpush2.msra.mxu0 0.0
    %948 = vmatprep.subr.mxu0 0.0
    %949 = vmatpush2.msra.mxu0 0.0
    %950 = vmatprep.subr.mxu0 0.0
    %951 = vmatpush2.msra.mxu0 0.0
    %952 = vmatprep.subr.mxu0 0.0
    %953 = vmatpush2.msra.mxu0 0.0
    %954 = vmatprep.subr.mxu0 0.0
    %955 = vmatpush2.msra.mxu0 0.0
    %956 = vmatprep.subr.mxu0 0.0
    %957 = vmatpush2.msra.mxu0 0.0
    %958 = vmatprep.subr.mxu0 0.0
    %959 = vmatpush2.msra.mxu0 0.0
    %960 = vmatprep.mubr.f32.mxu0 0.0
    %961 = vmatmul.mubr.f32.gmra.mxu0 %v894
    %v962 = vpop.f32.mrf.mxu0
    %v963 = vadd.f32 0.0, %v962
    %v964 = vpop.f32.mrf.mxu0
    %965 = vdwg.mxu0
    %967 = vrot.lane.b32.xlu0 %v386, 120
    %v968 = vpop.permute.xlu0 %967
    %v971 = vsel %vm389, %v888, 0
    %973 = vmatprep.subr.mxu0 0.0
    %974 = vmatpush1.msra.mxu0 0.0
    %975 = vmatprep.subr.mxu0 0.0
    %976 = vmatpush1.msra.mxu0 0.0
    %977 = vmatprep.subr.mxu0 0.0
    %978 = vmatpush1.msra.mxu0 0.0
    %979 = vmatprep.subr.mxu0 0.0
    %980 = vmatpush1.msra.mxu0 0.0
    %981 = vmatprep.subr.mxu0 0.0
    %982 = vmatpush1.msra.mxu0 0.0
    %983 = vmatprep.subr.mxu0 0.0
    %984 = vmatpush1.msra.mxu0 0.0
    %985 = vmatprep.subr.mxu0 0.0
    %986 = vmatpush1.msra.mxu0 0.0
    %987 = vmatprep.subr.mxu0 0.0
    %988 = vmatpush1.msra.mxu0 0.0
    %989 = vmatprep.subr.mxu0 0.0
    %990 = vmatpush1.msra.mxu0 0.0
    %991 = vmatprep.subr.mxu0 0.0
    %992 = vmatpush1.msra.mxu0 0.0
    %993 = vmatprep.subr.mxu0 0.0
    %994 = vmatpush1.msra.mxu0 0.0
    %995 = vmatprep.subr.mxu0 0.0
    %996 = vmatpush1.msra.mxu0 0.0
    %997 = vmatprep.subr.mxu0 0.0
    %998 = vmatpush1.msra.mxu0 0.0
    %999 = vmatprep.subr.mxu0 0.0
    %1000 = vmatpush1.msra.mxu0 0.0
    %1001 = vmatprep.subr.mxu0 0.0
    %1002 = vmatpush1.msra.mxu0 0.0
    %1003 = vmatprep.subr.mxu0 0.0
    %1004 = vmatpush1.msra.mxu0 %v968
    %1005 = vmatprep.subr.mxu0 0.0
    %1006 = vmatpush2.msra.mxu0 0.0
    %1007 = vmatprep.subr.mxu0 0.0
    %1008 = vmatpush2.msra.mxu0 0.0
    %1009 = vmatprep.subr.mxu0 0.0
    %1010 = vmatpush2.msra.mxu0 0.0
    %1011 = vmatprep.subr.mxu0 0.0
    %1012 = vmatpush2.msra.mxu0 0.0
    %1013 = vmatprep.subr.mxu0 0.0
    %1014 = vmatpush2.msra.mxu0 0.0
    %1015 = vmatprep.subr.mxu0 0.0
    %1016 = vmatpush2.msra.mxu0 0.0
    %1017 = vmatprep.subr.mxu0 0.0
    %1018 = vmatpush2.msra.mxu0 0.0
    %1019 = vmatprep.subr.mxu0 0.0
    %1020 = vmatpush2.msra.mxu0 0.0
    %1021 = vmatprep.subr.mxu0 0.0
    %1022 = vmatpush2.msra.mxu0 0.0
    %1023 = vmatprep.subr.mxu0 0.0
    %1024 = vmatpush2.msra.mxu0 0.0
    %1025 = vmatprep.subr.mxu0 0.0
    %1026 = vmatpush2.msra.mxu0 0.0
    %1027 = vmatprep.subr.mxu0 0.0
    %1028 = vmatpush2.msra.mxu0 0.0
    %1029 = vmatprep.subr.mxu0 0.0
    %1030 = vmatpush2.msra.mxu0 0.0
    %1031 = vmatprep.subr.mxu0 0.0
    %1032 = vmatpush2.msra.mxu0 0.0
    %1033 = vmatprep.subr.mxu0 0.0
    %1034 = vmatpush2.msra.mxu0 0.0
    %1035 = vmatprep.subr.mxu0 0.0
    %1036 = vmatpush2.msra.mxu0 0.0
    %1037 = vmatprep.mubr.f32.mxu0 0.0
    %1038 = vmatmul.mubr.f32.gmra.mxu0 %v971
    %v1039 = vpop.f32.mrf.mxu0
    %v1040 = vadd.f32 0.0, %v1039
    %v1041 = vpop.f32.mrf.mxu0
    %1042 = vdwg.mxu0
    %s1043 = scalar_lea.vmem %s9, 8
    %v1044 = vld [vmem:[%s1043] sm:$0xff]
    %v1046 = vsel %vm389, %v963, 0
    %v1049 = vsel %vm389, %v1040, 0
    %1051 = vmatprep.subr.mxu0 0.0
    %1052 = vmatpush1.msra.mxu0 0.0
    %1053 = vmatprep.subr.mxu0 0.0
    %1054 = vmatpush1.msra.mxu0 0.0
    %1055 = vmatprep.subr.mxu0 0.0
    %1056 = vmatpush1.msra.mxu0 0.0
    %1057 = vmatprep.subr.mxu0 0.0
    %1058 = vmatpush1.msra.mxu0 0.0
    %1059 = vmatprep.subr.mxu0 0.0
    %1060 = vmatpush1.msra.mxu0 0.0
    %1061 = vmatprep.subr.mxu0 0.0
    %1062 = vmatpush1.msra.mxu0 0.0
    %1063 = vmatprep.subr.mxu0 0.0
    %1064 = vmatpush1.msra.mxu0 0.0
    %1065 = vmatprep.subr.mxu0 0.0
    %1066 = vmatpush1.msra.mxu0 0.0
    %1067 = vmatprep.subr.mxu0 0.0
    %1068 = vmatpush1.msra.mxu0 0.0
    %1069 = vmatprep.subr.mxu0 0.0
    %1070 = vmatpush1.msra.mxu0 0.0
    %1071 = vmatprep.subr.mxu0 0.0
    %1072 = vmatpush1.msra.mxu0 0.0
    %1073 = vmatprep.subr.mxu0 0.0
    %1074 = vmatpush1.msra.mxu0 0.0
    %1075 = vmatprep.subr.mxu0 0.0
    %1076 = vmatpush1.msra.mxu0 0.0
    %1077 = vmatprep.subr.mxu0 0.0
    %1078 = vmatpush1.msra.mxu0 0.0
    %1079 = vmatprep.subr.mxu0 0.0
    %1080 = vmatpush1.msra.mxu0 0.0
    %1081 = vmatprep.subr.mxu0 0.0
    %1082 = vmatpush1.msra.mxu0 %v1044
    %1083 = vmatprep.subr.mxu0 0.0
    %1084 = vmatpush2.msra.mxu0 0.0
    %1085 = vmatprep.subr.mxu0 0.0
    %1086 = vmatpush2.msra.mxu0 0.0
    %1087 = vmatprep.subr.mxu0 0.0
    %1088 = vmatpush2.msra.mxu0 0.0
    %1089 = vmatprep.subr.mxu0 0.0
    %1090 = vmatpush2.msra.mxu0 0.0
    %1091 = vmatprep.subr.mxu0 0.0
    %1092 = vmatpush2.msra.mxu0 0.0
    %1093 = vmatprep.subr.mxu0 0.0
    %1094 = vmatpush2.msra.mxu0 0.0
    %1095 = vmatprep.subr.mxu0 0.0
    %1096 = vmatpush2.msra.mxu0 0.0
    %1097 = vmatprep.subr.mxu0 0.0
    %1098 = vmatpush2.msra.mxu0 0.0
    %1099 = vmatprep.subr.mxu0 0.0
    %1100 = vmatpush2.msra.mxu0 0.0
    %1101 = vmatprep.subr.mxu0 0.0
    %1102 = vmatpush2.msra.mxu0 0.0
    %1103 = vmatprep.subr.mxu0 0.0
    %1104 = vmatpush2.msra.mxu0 0.0
    %1105 = vmatprep.subr.mxu0 0.0
    %1106 = vmatpush2.msra.mxu0 0.0
    %1107 = vmatprep.subr.mxu0 0.0
    %1108 = vmatpush2.msra.mxu0 0.0
    %1109 = vmatprep.subr.mxu0 0.0
    %1110 = vmatpush2.msra.mxu0 0.0
    %1111 = vmatprep.subr.mxu0 0.0
    %1112 = vmatpush2.msra.mxu0 0.0
    %1113 = vmatprep.subr.mxu0 0.0
    %1114 = vmatpush2.msra.mxu0 0.0
    %1115 = vmatprep.mubr.f32.mxu0 0.0
    %1116 = vmatmul.mubr.f32.gmra.mxu0 %v1046
    %v1117 = vpop.f32.mrf.mxu0
    %v1118 = vadd.f32 0.0, %v1117
    %v1119 = vpop.f32.mrf.mxu0
    %1120 = vmatprep.mubr.f32.mxu0 0.0
    %1121 = vmatmul.mubr.f32.gmra.mxu0 %v1049
    %v1122 = vpop.f32.mrf.mxu0
    %v1123 = vadd.f32 0.0, %v1122
    %v1124 = vpop.f32.mrf.mxu0
    %1125 = vdwg.mxu0
    %v1127 = vsel %vm389, %v634, 0
    %v1130 = vsel %vm389, %v707, 0
    %1132 = vmatprep.subr.mxu0 0.0
    %1133 = vmatpush1.msra.mxu0 0.0
    %1134 = vmatprep.subr.mxu0 0.0
    %1135 = vmatpush1.msra.mxu0 0.0
    %1136 = vmatprep.subr.mxu0 0.0
    %1137 = vmatpush1.msra.mxu0 0.0
    %1138 = vmatprep.subr.mxu0 0.0
    %1139 = vmatpush1.msra.mxu0 0.0
    %1140 = vmatprep.subr.mxu0 0.0
    %1141 = vmatpush1.msra.mxu0 0.0
    %1142 = vmatprep.subr.mxu0 0.0
    %1143 = vmatpush1.msra.mxu0 0.0
    %1144 = vmatprep.subr.mxu0 0.0
    %1145 = vmatpush1.msra.mxu0 0.0
    %1146 = vmatprep.subr.mxu0 0.0
    %1147 = vmatpush1.msra.mxu0 0.0
    %1148 = vmatprep.subr.mxu0 0.0
    %1149 = vmatpush1.msra.mxu0 0.0
    %1150 = vmatprep.subr.mxu0 0.0
    %1151 = vmatpush1.msra.mxu0 0.0
    %1152 = vmatprep.subr.mxu0 0.0
    %1153 = vmatpush1.msra.mxu0 0.0
    %1154 = vmatprep.subr.mxu0 0.0
    %1155 = vmatpush1.msra.mxu0 0.0
    %1156 = vmatprep.subr.mxu0 0.0
    %1157 = vmatpush1.msra.mxu0 0.0
    %1158 = vmatprep.subr.mxu0 0.0
    %1159 = vmatpush1.msra.mxu0 0.0
    %1160 = vmatprep.subr.mxu0 0.0
    %1161 = vmatpush1.msra.mxu0 0.0
    %1162 = vmatprep.subr.mxu0 0.0
    %1163 = vmatpush1.msra.mxu0 %v710
    %1164 = vmatprep.subr.mxu0 0.0
    %1165 = vmatpush2.msra.mxu0 0.0
    %1166 = vmatprep.subr.mxu0 0.0
    %1167 = vmatpush2.msra.mxu0 0.0
    %1168 = vmatprep.subr.mxu0 0.0
    %1169 = vmatpush2.msra.mxu0 0.0
    %1170 = vmatprep.subr.mxu0 0.0
    %1171 = vmatpush2.msra.mxu0 0.0
    %1172 = vmatprep.subr.mxu0 0.0
    %1173 = vmatpush2.msra.mxu0 0.0
    %1174 = vmatprep.subr.mxu0 0.0
    %1175 = vmatpush2.msra.mxu0 0.0
    %1176 = vmatprep.subr.mxu0 0.0
    %1177 = vmatpush2.msra.mxu0 0.0
    %1178 = vmatprep.subr.mxu0 0.0
    %1179 = vmatpush2.msra.mxu0 0.0
    %1180 = vmatprep.subr.mxu0 0.0
    %1181 = vmatpush2.msra.mxu0 0.0
    %1182 = vmatprep.subr.mxu0 0.0
    %1183 = vmatpush2.msra.mxu0 0.0
    %1184 = vmatprep.subr.mxu0 0.0
    %1185 = vmatpush2.msra.mxu0 0.0
    %1186 = vmatprep.subr.mxu0 0.0
    %1187 = vmatpush2.msra.mxu0 0.0
    %1188 = vmatprep.subr.mxu0 0.0
    %1189 = vmatpush2.msra.mxu0 0.0
    %1190 = vmatprep.subr.mxu0 0.0
    %1191 = vmatpush2.msra.mxu0 0.0
    %1192 = vmatprep.subr.mxu0 0.0
    %1193 = vmatpush2.msra.mxu0 0.0
    %1194 = vmatprep.subr.mxu0 0.0
    %1195 = vmatpush2.msra.mxu0 0.0
    %1196 = vmatprep.mubr.f32.mxu0 0.0
    %1197 = vmatmul.mubr.f32.gmra.mxu0 %v1127
    %v1198 = vpop.f32.mrf.mxu0
    %v1199 = vadd.f32 %v1118, %v1198
    %v1200 = vpop.f32.mrf.mxu0
    %1201 = vmatprep.mubr.f32.mxu0 0.0
    %1202 = vmatmul.mubr.f32.gmra.mxu0 %v1130
    %v1203 = vpop.f32.mrf.mxu0
    %v1204 = vadd.f32 %v1123, %v1203
    %v1205 = vpop.f32.mrf.mxu0
    %1206 = vdwg.mxu0
    %1207 = vrot.lane.b32.xlu0 %v203, 112
    %v1208 = vpop.permute.xlu0 %1207
    %1209 = vrot.lane.b32.xlu0 %v289, 112
    %v1210 = vpop.permute.xlu0 %1209
    %v1211 = vsel %vm389, %v1208, 0
    %v1213 = vsel %vm389, %v1210, 0
    %1215 = vmatprep.subr.mxu0 0.0
    %1216 = vmatpush1.xpose.msra.mxu0 0.0
    %1217 = vmatprep.subr.mxu0 0.0
    %1218 = vmatpush1.xpose.msra.mxu0 0.0
    %1219 = vmatprep.subr.mxu0 0.0
    %1220 = vmatpush1.xpose.msra.mxu0 0.0
    %1221 = vmatprep.subr.mxu0 0.0
    %1222 = vmatpush1.xpose.msra.mxu0 0.0
    %1223 = vmatprep.subr.mxu0 0.0
    %1224 = vmatpush1.xpose.msra.mxu0 0.0
    %1225 = vmatprep.subr.mxu0 0.0
    %1226 = vmatpush1.xpose.msra.mxu0 0.0
    %1227 = vmatprep.subr.mxu0 0.0
    %1228 = vmatpush1.xpose.msra.mxu0 0.0
    %1229 = vmatprep.subr.mxu0 0.0
    %1230 = vmatpush1.xpose.msra.mxu0 0.0
    %1231 = vmatprep.subr.mxu0 0.0
    %1232 = vmatpush1.xpose.msra.mxu0 0.0
    %1233 = vmatprep.subr.mxu0 0.0
    %1234 = vmatpush1.xpose.msra.mxu0 0.0
    %1235 = vmatprep.subr.mxu0 0.0
    %1236 = vmatpush1.xpose.msra.mxu0 0.0
    %1237 = vmatprep.subr.mxu0 0.0
    %1238 = vmatpush1.xpose.msra.mxu0 0.0
    %1239 = vmatprep.subr.mxu0 0.0
    %1240 = vmatpush1.xpose.msra.mxu0 0.0
    %1241 = vmatprep.subr.mxu0 0.0
    %1242 = vmatpush1.xpose.msra.mxu0 0.0
    %1243 = vmatprep.subr.mxu0 0.0
    %1244 = vmatpush1.xpose.msra.mxu0 0.0
    %1245 = vmatprep.subr.mxu0 0.0
    %1246 = vmatpush1.xpose.msra.mxu0 %v1213
    %1247 = vmatprep.subr.mxu0 0.0
    %1248 = vmatpush2.xpose.msra.mxu0 0.0
    %1249 = vmatprep.subr.mxu0 0.0
    %1250 = vmatpush2.xpose.msra.mxu0 0.0
    %1251 = vmatprep.subr.mxu0 0.0
    %1252 = vmatpush2.xpose.msra.mxu0 0.0
    %1253 = vmatprep.subr.mxu0 0.0
    %1254 = vmatpush2.xpose.msra.mxu0 0.0
    %1255 = vmatprep.subr.mxu0 0.0
    %1256 = vmatpush2.xpose.msra.mxu0 0.0
    %1257 = vmatprep.subr.mxu0 0.0
    %1258 = vmatpush2.xpose.msra.mxu0 0.0
    %1259 = vmatprep.subr.mxu0 0.0
    %1260 = vmatpush2.xpose.msra.mxu0 0.0
    %1261 = vmatprep.subr.mxu0 0.0
    %1262 = vmatpush2.xpose.msra.mxu0 0.0
    %1263 = vmatprep.subr.mxu0 0.0
    %1264 = vmatpush2.xpose.msra.mxu0 0.0
    %1265 = vmatprep.subr.mxu0 0.0
    %1266 = vmatpush2.xpose.msra.mxu0 0.0
    %1267 = vmatprep.subr.mxu0 0.0
    %1268 = vmatpush2.xpose.msra.mxu0 0.0
    %1269 = vmatprep.subr.mxu0 0.0
    %1270 = vmatpush2.xpose.msra.mxu0 0.0
    %1271 = vmatprep.subr.mxu0 0.0
    %1272 = vmatpush2.xpose.msra.mxu0 0.0
    %1273 = vmatprep.subr.mxu0 0.0
    %1274 = vmatpush2.xpose.msra.mxu0 0.0
    %1275 = vmatprep.subr.mxu0 0.0
    %1276 = vmatpush2.xpose.msra.mxu0 0.0
    %1277 = vmatprep.subr.mxu0 0.0
    %1278 = vmatpush2.xpose.msra.mxu0 0.0
    %1279 = vmatprep.mubr.f32.mxu0 0.0
    %1280 = vmatmul.mubr.f32.gmra.mxu0 %v1211
    %v1281 = vpop.f32.mrf.mxu0
    %v1282 = vadd.f32 0.0, %v1281
    %v1283 = vpop.f32.mrf.mxu0
    %1284 = vdwg.mxu0
    %1285 = vrot.lane.b32.xlu0 %v204, 112
    %v1286 = vpop.permute.xlu0 %1285
    %1287 = vrot.lane.b32.xlu0 %v294, 112
    %v1288 = vpop.permute.xlu0 %1287
    %v1289 = vsel %vm389, %v1286, 0
    %v1291 = vsel %vm389, %v1288, 0
    %1293 = vmatprep.subr.mxu0 0.0
    %1294 = vmatpush1.xpose.msra.mxu0 0.0
    %1295 = vmatprep.subr.mxu0 0.0
    %1296 = vmatpush1.xpose.msra.mxu0 0.0
    %1297 = vmatprep.subr.mxu0 0.0
    %1298 = vmatpush1.xpose.msra.mxu0 0.0
    %1299 = vmatprep.subr.mxu0 0.0
    %1300 = vmatpush1.xpose.msra.mxu0 0.0
    %1301 = vmatprep.subr.mxu0 0.0
    %1302 = vmatpush1.xpose.msra.mxu0 0.0
    %1303 = vmatprep.subr.mxu0 0.0
    %1304 = vmatpush1.xpose.msra.mxu0 0.0
    %1305 = vmatprep.subr.mxu0 0.0
    %1306 = vmatpush1.xpose.msra.mxu0 0.0
    %1307 = vmatprep.subr.mxu0 0.0
    %1308 = vmatpush1.xpose.msra.mxu0 0.0
    %1309 = vmatprep.subr.mxu0 0.0
    %1310 = vmatpush1.xpose.msra.mxu0 0.0
    %1311 = vmatprep.subr.mxu0 0.0
    %1312 = vmatpush1.xpose.msra.mxu0 0.0
    %1313 = vmatprep.subr.mxu0 0.0
    %1314 = vmatpush1.xpose.msra.mxu0 0.0
    %1315 = vmatprep.subr.mxu0 0.0
    %1316 = vmatpush1.xpose.msra.mxu0 0.0
    %1317 = vmatprep.subr.mxu0 0.0
    %1318 = vmatpush1.xpose.msra.mxu0 0.0
    %1319 = vmatprep.subr.mxu0 0.0
    %1320 = vmatpush1.xpose.msra.mxu0 0.0
    %1321 = vmatprep.subr.mxu0 0.0
    %1322 = vmatpush1.xpose.msra.mxu0 0.0
    %1323 = vmatprep.subr.mxu0 0.0
    %1324 = vmatpush1.xpose.msra.mxu0 %v1291
    %1325 = vmatprep.subr.mxu0 0.0
    %1326 = vmatpush2.xpose.msra.mxu0 0.0
    %1327 = vmatprep.subr.mxu0 0.0
    %1328 = vmatpush2.xpose.msra.mxu0 0.0
    %1329 = vmatprep.subr.mxu0 0.0
    %1330 = vmatpush2.xpose.msra.mxu0 0.0
    %1331 = vmatprep.subr.mxu0 0.0
    %1332 = vmatpush2.xpose.msra.mxu0 0.0
    %1333 = vmatprep.subr.mxu0 0.0
    %1334 = vmatpush2.xpose.msra.mxu0 0.0
    %1335 = vmatprep.subr.mxu0 0.0
    %1336 = vmatpush2.xpose.msra.mxu0 0.0
    %1337 = vmatprep.subr.mxu0 0.0
    %1338 = vmatpush2.xpose.msra.mxu0 0.0
    %1339 = vmatprep.subr.mxu0 0.0
    %1340 = vmatpush2.xpose.msra.mxu0 0.0
    %1341 = vmatprep.subr.mxu0 0.0
    %1342 = vmatpush2.xpose.msra.mxu0 0.0
    %1343 = vmatprep.subr.mxu0 0.0
    %1344 = vmatpush2.xpose.msra.mxu0 0.0
    %1345 = vmatprep.subr.mxu0 0.0
    %1346 = vmatpush2.xpose.msra.mxu0 0.0
    %1347 = vmatprep.subr.mxu0 0.0
    %1348 = vmatpush2.xpose.msra.mxu0 0.0
    %1349 = vmatprep.subr.mxu0 0.0
    %1350 = vmatpush2.xpose.msra.mxu0 0.0
    %1351 = vmatprep.subr.mxu0 0.0
    %1352 = vmatpush2.xpose.msra.mxu0 0.0
    %1353 = vmatprep.subr.mxu0 0.0
    %1354 = vmatpush2.xpose.msra.mxu0 0.0
    %1355 = vmatprep.subr.mxu0 0.0
    %1356 = vmatpush2.xpose.msra.mxu0 0.0
    %1357 = vmatprep.mubr.f32.mxu0 0.0
    %1358 = vmatmul.mubr.f32.gmra.mxu0 %v1289
    %v1359 = vpop.f32.mrf.mxu0
    %v1360 = vadd.f32 0.0, %v1359
    %v1361 = vpop.f32.mrf.mxu0
    %1362 = vdwg.mxu0
    %v1363 = vsel %vm389, %v1282, -inf
    %1364 = vmax.xlane.f32.xlu0 %v1363
    %v1365 = vpop.xlane.xlu0 %1364
    %v1366 = vsel %vm389, %v1360, -inf
    %1367 = vmax.xlane.f32.xlu0 %v1366
    %v1368 = vpop.xlane.xlu0 %1367
    %v1369 = vsub.f32 %v1282, %v1365
    %v1370 = vsub.f32 %v1360, %v1368
    %v1371 = vmul.f32 %v1369, 1.442695
    %v1372 = vpow.pop %v1371
    %v1373 = vmul.f32 %v1370, 1.442695
    %v1374 = vpow.pop %v1373
    %v1375 = vsel %vm389, %v1372, 0.0
    %1376 = vadd.xlane.f32.xlu0 %v1375
    %v1377 = vpop.xlane.xlu0 %1376
    %v1378 = vsel %vm389, %v1374, 0.0
    %1379 = vadd.xlane.f32.xlu0 %v1378
    %v1380 = vpop.xlane.xlu0 %1379
    %v1381 = vrcp.pop %v1377
    %v1382 = vrcp.pop %v1380
    %v1383 = vmul.f32 %v1372, %v1381
    %v1384 = vmul.f32 %v1374, %v1382
    %1385 = vrot.lane.b32.xlu0 %v381, 112
    %v1386 = vpop.permute.xlu0 %1385
    %v1389 = vsel %vm389, %v1383, 0
    %1391 = vmatprep.subr.mxu0 0.0
    %1392 = vmatpush1.msra.mxu0 0.0
    %1393 = vmatprep.subr.mxu0 0.0
    %1394 = vmatpush1.msra.mxu0 0.0
    %1395 = vmatprep.subr.mxu0 0.0
    %1396 = vmatpush1.msra.mxu0 0.0
    %1397 = vmatprep.subr.mxu0 0.0
    %1398 = vmatpush1.msra.mxu0 0.0
    %1399 = vmatprep.subr.mxu0 0.0
    %1400 = vmatpush1.msra.mxu0 0.0
    %1401 = vmatprep.subr.mxu0 0.0
    %1402 = vmatpush1.msra.mxu0 0.0
    %1403 = vmatprep.subr.mxu0 0.0
    %1404 = vmatpush1.msra.mxu0 0.0
    %1405 = vmatprep.subr.mxu0 0.0
    %1406 = vmatpush1.msra.mxu0 0.0
    %1407 = vmatprep.subr.mxu0 0.0
    %1408 = vmatpush1.msra.mxu0 0.0
    %1409 = vmatprep.subr.mxu0 0.0
    %1410 = vmatpush1.msra.mxu0 0.0
    %1411 = vmatprep.subr.mxu0 0.0
    %1412 = vmatpush1.msra.mxu0 0.0
    %1413 = vmatprep.subr.mxu0 0.0
    %1414 = vmatpush1.msra.mxu0 0.0
    %1415 = vmatprep.subr.mxu0 0.0
    %1416 = vmatpush1.msra.mxu0 0.0
    %1417 = vmatprep.subr.mxu0 0.0
    %1418 = vmatpush1.msra.mxu0 0.0
    %1419 = vmatprep.subr.mxu0 0.0
    %1420 = vmatpush1.msra.mxu0 0.0
    %1421 = vmatprep.subr.mxu0 0.0
    %1422 = vmatpush1.msra.mxu0 %v1386
    %1423 = vmatprep.subr.mxu0 0.0
    %1424 = vmatpush2.msra.mxu0 0.0
    %1425 = vmatprep.subr.mxu0 0.0
    %1426 = vmatpush2.msra.mxu0 0.0
    %1427 = vmatprep.subr.mxu0 0.0
    %1428 = vmatpush2.msra.mxu0 0.0
    %1429 = vmatprep.subr.mxu0 0.0
    %1430 = vmatpush2.msra.mxu0 0.0
    %1431 = vmatprep.subr.mxu0 0.0
    %1432 = vmatpush2.msra.mxu0 0.0
    %1433 = vmatprep.subr.mxu0 0.0
    %1434 = vmatpush2.msra.mxu0 0.0
    %1435 = vmatprep.subr.mxu0 0.0
    %1436 = vmatpush2.msra.mxu0 0.0
    %1437 = vmatprep.subr.mxu0 0.0
    %1438 = vmatpush2.msra.mxu0 0.0
    %1439 = vmatprep.subr.mxu0 0.0
    %1440 = vmatpush2.msra.mxu0 0.0
    %1441 = vmatprep.subr.mxu0 0.0
    %1442 = vmatpush2.msra.mxu0 0.0
    %1443 = vmatprep.subr.mxu0 0.0
    %1444 = vmatpush2.msra.mxu0 0.0
    %1445 = vmatprep.subr.mxu0 0.0
    %1446 = vmatpush2.msra.mxu0 0.0
    %1447 = vmatprep.subr.mxu0 0.0
    %1448 = vmatpush2.msra.mxu0 0.0
    %1449 = vmatprep.subr.mxu0 0.0
    %1450 = vmatpush2.msra.mxu0 0.0
    %1451 = vmatprep.subr.mxu0 0.0
    %1452 = vmatpush2.msra.mxu0 0.0
    %1453 = vmatprep.subr.mxu0 0.0
    %1454 = vmatpush2.msra.mxu0 0.0
    %1455 = vmatprep.mubr.f32.mxu0 0.0
    %1456 = vmatmul.mubr.f32.gmra.mxu0 %v1389
    %v1457 = vpop.f32.mrf.mxu0
    %v1458 = vadd.f32 0.0, %v1457
    %v1459 = vpop.f32.mrf.mxu0
    %1460 = vdwg.mxu0
    %1461 = vrot.lane.b32.xlu0 %v386, 112
    %v1462 = vpop.permute.xlu0 %1461
    %v1465 = vsel %vm389, %v1384, 0
    %1467 = vmatprep.subr.mxu0 0.0
    %1468 = vmatpush1.msra.mxu0 0.0
    %1469 = vmatprep.subr.mxu0 0.0
    %1470 = vmatpush1.msra.mxu0 0.0
    %1471 = vmatprep.subr.mxu0 0.0
    %1472 = vmatpush1.msra.mxu0 0.0
    %1473 = vmatprep.subr.mxu0 0.0
    %1474 = vmatpush1.msra.mxu0 0.0
    %1475 = vmatprep.subr.mxu0 0.0
    %1476 = vmatpush1.msra.mxu0 0.0
    %1477 = vmatprep.subr.mxu0 0.0
    %1478 = vmatpush1.msra.mxu0 0.0
    %1479 = vmatprep.subr.mxu0 0.0
    %1480 = vmatpush1.msra.mxu0 0.0
    %1481 = vmatprep.subr.mxu0 0.0
    %1482 = vmatpush1.msra.mxu0 0.0
    %1483 = vmatprep.subr.mxu0 0.0
    %1484 = vmatpush1.msra.mxu0 0.0
    %1485 = vmatprep.subr.mxu0 0.0
    %1486 = vmatpush1.msra.mxu0 0.0
    %1487 = vmatprep.subr.mxu0 0.0
    %1488 = vmatpush1.msra.mxu0 0.0
    %1489 = vmatprep.subr.mxu0 0.0
    %1490 = vmatpush1.msra.mxu0 0.0
    %1491 = vmatprep.subr.mxu0 0.0
    %1492 = vmatpush1.msra.mxu0 0.0
    %1493 = vmatprep.subr.mxu0 0.0
    %1494 = vmatpush1.msra.mxu0 0.0
    %1495 = vmatprep.subr.mxu0 0.0
    %1496 = vmatpush1.msra.mxu0 0.0
    %1497 = vmatprep.subr.mxu0 0.0
    %1498 = vmatpush1.msra.mxu0 %v1462
    %1499 = vmatprep.subr.mxu0 0.0
    %1500 = vmatpush2.msra.mxu0 0.0
    %1501 = vmatprep.subr.mxu0 0.0
    %1502 = vmatpush2.msra.mxu0 0.0
    %1503 = vmatprep.subr.mxu0 0.0
    %1504 = vmatpush2.msra.mxu0 0.0
    %1505 = vmatprep.subr.mxu0 0.0
    %1506 = vmatpush2.msra.mxu0 0.0
    %1507 = vmatprep.subr.mxu0 0.0
    %1508 = vmatpush2.msra.mxu0 0.0
    %1509 = vmatprep.subr.mxu0 0.0
    %1510 = vmatpush2.msra.mxu0 0.0
    %1511 = vmatprep.subr.mxu0 0.0
    %1512 = vmatpush2.msra.mxu0 0.0
    %1513 = vmatprep.subr.mxu0 0.0
    %1514 = vmatpush2.msra.mxu0 0.0
    %1515 = vmatprep.subr.mxu0 0.0
    %1516 = vmatpush2.msra.mxu0 0.0
    %1517 = vmatprep.subr.mxu0 0.0
    %1518 = vmatpush2.msra.mxu0 0.0
    %1519 = vmatprep.subr.mxu0 0.0
    %1520 = vmatpush2.msra.mxu0 0.0
    %1521 = vmatprep.subr.mxu0 0.0
    %1522 = vmatpush2.msra.mxu0 0.0
    %1523 = vmatprep.subr.mxu0 0.0
    %1524 = vmatpush2.msra.mxu0 0.0
    %1525 = vmatprep.subr.mxu0 0.0
    %1526 = vmatpush2.msra.mxu0 0.0
    %1527 = vmatprep.subr.mxu0 0.0
    %1528 = vmatpush2.msra.mxu0 0.0
    %1529 = vmatprep.subr.mxu0 0.0
    %1530 = vmatpush2.msra.mxu0 0.0
    %1531 = vmatprep.mubr.f32.mxu0 0.0
    %1532 = vmatmul.mubr.f32.gmra.mxu0 %v1465
    %v1533 = vpop.f32.mrf.mxu0
    %v1534 = vadd.f32 0.0, %v1533
    %v1535 = vpop.f32.mrf.mxu0
    %1536 = vdwg.mxu0
    %s1537 = scalar_lea.vmem %s9, 16
    %v1538 = vld [vmem:[%s1537] sm:$0xff]
    %v1540 = vsel %vm389, %v1458, 0
    %v1543 = vsel %vm389, %v1534, 0
    %1545 = vmatprep.subr.mxu0 0.0
    %1546 = vmatpush1.msra.mxu0 0.0
    %1547 = vmatprep.subr.mxu0 0.0
    %1548 = vmatpush1.msra.mxu0 0.0
    %1549 = vmatprep.subr.mxu0 0.0
    %1550 = vmatpush1.msra.mxu0 0.0
    %1551 = vmatprep.subr.mxu0 0.0
    %1552 = vmatpush1.msra.mxu0 0.0
    %1553 = vmatprep.subr.mxu0 0.0
    %1554 = vmatpush1.msra.mxu0 0.0
    %1555 = vmatprep.subr.mxu0 0.0
    %1556 = vmatpush1.msra.mxu0 0.0
    %1557 = vmatprep.subr.mxu0 0.0
    %1558 = vmatpush1.msra.mxu0 0.0
    %1559 = vmatprep.subr.mxu0 0.0
    %1560 = vmatpush1.msra.mxu0 0.0
    %1561 = vmatprep.subr.mxu0 0.0
    %1562 = vmatpush1.msra.mxu0 0.0
    %1563 = vmatprep.subr.mxu0 0.0
    %1564 = vmatpush1.msra.mxu0 0.0
    %1565 = vmatprep.subr.mxu0 0.0
    %1566 = vmatpush1.msra.mxu0 0.0
    %1567 = vmatprep.subr.mxu0 0.0
    %1568 = vmatpush1.msra.mxu0 0.0
    %1569 = vmatprep.subr.mxu0 0.0
    %1570 = vmatpush1.msra.mxu0 0.0
    %1571 = vmatprep.subr.mxu0 0.0
    %1572 = vmatpush1.msra.mxu0 0.0
    %1573 = vmatprep.subr.mxu0 0.0
    %1574 = vmatpush1.msra.mxu0 0.0
    %1575 = vmatprep.subr.mxu0 0.0
    %1576 = vmatpush1.msra.mxu0 %v1538
    %1577 = vmatprep.subr.mxu0 0.0
    %1578 = vmatpush2.msra.mxu0 0.0
    %1579 = vmatprep.subr.mxu0 0.0
    %1580 = vmatpush2.msra.mxu0 0.0
    %1581 = vmatprep.subr.mxu0 0.0
    %1582 = vmatpush2.msra.mxu0 0.0
    %1583 = vmatprep.subr.mxu0 0.0
    %1584 = vmatpush2.msra.mxu0 0.0
    %1585 = vmatprep.subr.mxu0 0.0
    %1586 = vmatpush2.msra.mxu0 0.0
    %1587 = vmatprep.subr.mxu0 0.0
    %1588 = vmatpush2.msra.mxu0 0.0
    %1589 = vmatprep.subr.mxu0 0.0
    %1590 = vmatpush2.msra.mxu0 0.0
    %1591 = vmatprep.subr.mxu0 0.0
    %1592 = vmatpush2.msra.mxu0 0.0
    %1593 = vmatprep.subr.mxu0 0.0
    %1594 = vmatpush2.msra.mxu0 0.0
    %1595 = vmatprep.subr.mxu0 0.0
    %1596 = vmatpush2.msra.mxu0 0.0
    %1597 = vmatprep.subr.mxu0 0.0
    %1598 = vmatpush2.msra.mxu0 0.0
    %1599 = vmatprep.subr.mxu0 0.0
    %1600 = vmatpush2.msra.mxu0 0.0
    %1601 = vmatprep.subr.mxu0 0.0
    %1602 = vmatpush2.msra.mxu0 0.0
    %1603 = vmatprep.subr.mxu0 0.0
    %1604 = vmatpush2.msra.mxu0 0.0
    %1605 = vmatprep.subr.mxu0 0.0
    %1606 = vmatpush2.msra.mxu0 0.0
    %1607 = vmatprep.subr.mxu0 0.0
    %1608 = vmatpush2.msra.mxu0 0.0
    %1609 = vmatprep.mubr.f32.mxu0 0.0
    %1610 = vmatmul.mubr.f32.gmra.mxu0 %v1540
    %v1611 = vpop.f32.mrf.mxu0
    %v1612 = vadd.f32 0.0, %v1611
    %v1613 = vpop.f32.mrf.mxu0
    %1614 = vmatprep.mubr.f32.mxu0 0.0
    %1615 = vmatmul.mubr.f32.gmra.mxu0 %v1543
    %v1616 = vpop.f32.mrf.mxu0
    %v1617 = vadd.f32 0.0, %v1616
    %v1618 = vpop.f32.mrf.mxu0
    %1619 = vdwg.mxu0
    %v1620 = vadd.f32 %v1199, %v1612
    %v1621 = vadd.f32 %v1204, %v1617
    %1622 = vrot.lane.b32.xlu0 %v203, 104
    %v1623 = vpop.permute.xlu0 %1622
    %1624 = vrot.lane.b32.xlu0 %v289, 104
    %v1625 = vpop.permute.xlu0 %1624
    %v1626 = vsel %vm389, %v1623, 0
    %v1628 = vsel %vm389, %v1625, 0
    %1630 = vmatprep.subr.mxu0 0.0
    %1631 = vmatpush1.xpose.msra.mxu0 0.0
    %1632 = vmatprep.subr.mxu0 0.0
    %1633 = vmatpush1.xpose.msra.mxu0 0.0
    %1634 = vmatprep.subr.mxu0 0.0
    %1635 = vmatpush1.xpose.msra.mxu0 0.0
    %1636 = vmatprep.subr.mxu0 0.0
    %1637 = vmatpush1.xpose.msra.mxu0 0.0
    %1638 = vmatprep.subr.mxu0 0.0
    %1639 = vmatpush1.xpose.msra.mxu0 0.0
    %1640 = vmatprep.subr.mxu0 0.0
    %1641 = vmatpush1.xpose.msra.mxu0 0.0
    %1642 = vmatprep.subr.mxu0 0.0
    %1643 = vmatpush1.xpose.msra.mxu0 0.0
    %1644 = vmatprep.subr.mxu0 0.0
    %1645 = vmatpush1.xpose.msra.mxu0 0.0
    %1646 = vmatprep.subr.mxu0 0.0
    %1647 = vmatpush1.xpose.msra.mxu0 0.0
    %1648 = vmatprep.subr.mxu0 0.0
    %1649 = vmatpush1.xpose.msra.mxu0 0.0
    %1650 = vmatprep.subr.mxu0 0.0
    %1651 = vmatpush1.xpose.msra.mxu0 0.0
    %1652 = vmatprep.subr.mxu0 0.0
    %1653 = vmatpush1.xpose.msra.mxu0 0.0
    %1654 = vmatprep.subr.mxu0 0.0
    %1655 = vmatpush1.xpose.msra.mxu0 0.0
    %1656 = vmatprep.subr.mxu0 0.0
    %1657 = vmatpush1.xpose.msra.mxu0 0.0
    %1658 = vmatprep.subr.mxu0 0.0
    %1659 = vmatpush1.xpose.msra.mxu0 0.0
    %1660 = vmatprep.subr.mxu0 0.0
    %1661 = vmatpush1.xpose.msra.mxu0 %v1628
    %1662 = vmatprep.subr.mxu0 0.0
    %1663 = vmatpush2.xpose.msra.mxu0 0.0
    %1664 = vmatprep.subr.mxu0 0.0
    %1665 = vmatpush2.xpose.msra.mxu0 0.0
    %1666 = vmatprep.subr.mxu0 0.0
    %1667 = vmatpush2.xpose.msra.mxu0 0.0
    %1668 = vmatprep.subr.mxu0 0.0
    %1669 = vmatpush2.xpose.msra.mxu0 0.0
    %1670 = vmatprep.subr.mxu0 0.0
    %1671 = vmatpush2.xpose.msra.mxu0 0.0
    %1672 = vmatprep.subr.mxu0 0.0
    %1673 = vmatpush2.xpose.msra.mxu0 0.0
    %1674 = vmatprep.subr.mxu0 0.0
    %1675 = vmatpush2.xpose.msra.mxu0 0.0
    %1676 = vmatprep.subr.mxu0 0.0
    %1677 = vmatpush2.xpose.msra.mxu0 0.0
    %1678 = vmatprep.subr.mxu0 0.0
    %1679 = vmatpush2.xpose.msra.mxu0 0.0
    %1680 = vmatprep.subr.mxu0 0.0
    %1681 = vmatpush2.xpose.msra.mxu0 0.0
    %1682 = vmatprep.subr.mxu0 0.0
    %1683 = vmatpush2.xpose.msra.mxu0 0.0
    %1684 = vmatprep.subr.mxu0 0.0
    %1685 = vmatpush2.xpose.msra.mxu0 0.0
    %1686 = vmatprep.subr.mxu0 0.0
    %1687 = vmatpush2.xpose.msra.mxu0 0.0
    %1688 = vmatprep.subr.mxu0 0.0
    %1689 = vmatpush2.xpose.msra.mxu0 0.0
    %1690 = vmatprep.subr.mxu0 0.0
    %1691 = vmatpush2.xpose.msra.mxu0 0.0
    %1692 = vmatprep.subr.mxu0 0.0
    %1693 = vmatpush2.xpose.msra.mxu0 0.0
    %1694 = vmatprep.mubr.f32.mxu0 0.0
    %1695 = vmatmul.mubr.f32.gmra.mxu0 %v1626
    %v1696 = vpop.f32.mrf.mxu0
    %v1697 = vadd.f32 0.0, %v1696
    %v1698 = vpop.f32.mrf.mxu0
    %1699 = vdwg.mxu0
    %1700 = vrot.lane.b32.xlu0 %v204, 104
    %v1701 = vpop.permute.xlu0 %1700
    %1702 = vrot.lane.b32.xlu0 %v294, 104
    %v1703 = vpop.permute.xlu0 %1702
    %v1704 = vsel %vm389, %v1701, 0
    %v1706 = vsel %vm389, %v1703, 0
    %1708 = vmatprep.subr.mxu0 0.0
    %1709 = vmatpush1.xpose.msra.mxu0 0.0
    %1710 = vmatprep.subr.mxu0 0.0
    %1711 = vmatpush1.xpose.msra.mxu0 0.0
    %1712 = vmatprep.subr.mxu0 0.0
    %1713 = vmatpush1.xpose.msra.mxu0 0.0
    %1714 = vmatprep.subr.mxu0 0.0
    %1715 = vmatpush1.xpose.msra.mxu0 0.0
    %1716 = vmatprep.subr.mxu0 0.0
    %1717 = vmatpush1.xpose.msra.mxu0 0.0
    %1718 = vmatprep.subr.mxu0 0.0
    %1719 = vmatpush1.xpose.msra.mxu0 0.0
    %1720 = vmatprep.subr.mxu0 0.0
    %1721 = vmatpush1.xpose.msra.mxu0 0.0
    %1722 = vmatprep.subr.mxu0 0.0
    %1723 = vmatpush1.xpose.msra.mxu0 0.0
    %1724 = vmatprep.subr.mxu0 0.0
    %1725 = vmatpush1.xpose.msra.mxu0 0.0
    %1726 = vmatprep.subr.mxu0 0.0
    %1727 = vmatpush1.xpose.msra.mxu0 0.0
    %1728 = vmatprep.subr.mxu0 0.0
    %1729 = vmatpush1.xpose.msra.mxu0 0.0
    %1730 = vmatprep.subr.mxu0 0.0
    %1731 = vmatpush1.xpose.msra.mxu0 0.0
    %1732 = vmatprep.subr.mxu0 0.0
    %1733 = vmatpush1.xpose.msra.mxu0 0.0
    %1734 = vmatprep.subr.mxu0 0.0
    %1735 = vmatpush1.xpose.msra.mxu0 0.0
    %1736 = vmatprep.subr.mxu0 0.0
    %1737 = vmatpush1.xpose.msra.mxu0 0.0
    %1738 = vmatprep.subr.mxu0 0.0
    %1739 = vmatpush1.xpose.msra.mxu0 %v1706
    %1740 = vmatprep.subr.mxu0 0.0
    %1741 = vmatpush2.xpose.msra.mxu0 0.0
    %1742 = vmatprep.subr.mxu0 0.0
    %1743 = vmatpush2.xpose.msra.mxu0 0.0
    %1744 = vmatprep.subr.mxu0 0.0
    %1745 = vmatpush2.xpose.msra.mxu0 0.0
    %1746 = vmatprep.subr.mxu0 0.0
    %1747 = vmatpush2.xpose.msra.mxu0 0.0
    %1748 = vmatprep.subr.mxu0 0.0
    %1749 = vmatpush2.xpose.msra.mxu0 0.0
    %1750 = vmatprep.subr.mxu0 0.0
    %1751 = vmatpush2.xpose.msra.mxu0 0.0
    %1752 = vmatprep.subr.mxu0 0.0
    %1753 = vmatpush2.xpose.msra.mxu0 0.0
    %1754 = vmatprep.subr.mxu0 0.0
    %1755 = vmatpush2.xpose.msra.mxu0 0.0
    %1756 = vmatprep.subr.mxu0 0.0
    %1757 = vmatpush2.xpose.msra.mxu0 0.0
    %1758 = vmatprep.subr.mxu0 0.0
    %1759 = vmatpush2.xpose.msra.mxu0 0.0
    %1760 = vmatprep.subr.mxu0 0.0
    %1761 = vmatpush2.xpose.msra.mxu0 0.0
    %1762 = vmatprep.subr.mxu0 0.0
    %1763 = vmatpush2.xpose.msra.mxu0 0.0
    %1764 = vmatprep.subr.mxu0 0.0
    %1765 = vmatpush2.xpose.msra.mxu0 0.0
    %1766 = vmatprep.subr.mxu0 0.0
    %1767 = vmatpush2.xpose.msra.mxu0 0.0
    %1768 = vmatprep.subr.mxu0 0.0
    %1769 = vmatpush2.xpose.msra.mxu0 0.0
    %1770 = vmatprep.subr.mxu0 0.0
    %1771 = vmatpush2.xpose.msra.mxu0 0.0
    %1772 = vmatprep.mubr.f32.mxu0 0.0
    %1773 = vmatmul.mubr.f32.gmra.mxu0 %v1704
    %v1774 = vpop.f32.mrf.mxu0
    %v1775 = vadd.f32 0.0, %v1774
    %v1776 = vpop.f32.mrf.mxu0
    %1777 = vdwg.mxu0
    %v1778 = vsel %vm389, %v1697, -inf
    %1779 = vmax.xlane.f32.xlu0 %v1778
    %v1780 = vpop.xlane.xlu0 %1779
    %v1781 = vsel %vm389, %v1775, -inf
    %1782 = vmax.xlane.f32.xlu0 %v1781
    %v1783 = vpop.xlane.xlu0 %1782
    %v1784 = vsub.f32 %v1697, %v1780
    %v1785 = vsub.f32 %v1775, %v1783
    %v1786 = vmul.f32 %v1784, 1.442695
    %v1787 = vpow.pop %v1786
    %v1788 = vmul.f32 %v1785, 1.442695
    %v1789 = vpow.pop %v1788
    %v1790 = vsel %vm389, %v1787, 0.0
    %1791 = vadd.xlane.f32.xlu0 %v1790
    %v1792 = vpop.xlane.xlu0 %1791
    %v1793 = vsel %vm389, %v1789, 0.0
    %1794 = vadd.xlane.f32.xlu0 %v1793
    %v1795 = vpop.xlane.xlu0 %1794
    %v1796 = vrcp.pop %v1792
    %v1797 = vrcp.pop %v1795
    %v1798 = vmul.f32 %v1787, %v1796
    %v1799 = vmul.f32 %v1789, %v1797
    %1800 = vrot.lane.b32.xlu0 %v381, 104
    %v1801 = vpop.permute.xlu0 %1800
    %v1804 = vsel %vm389, %v1798, 0
    %1806 = vmatprep.subr.mxu0 0.0
    %1807 = vmatpush1.msra.mxu0 0.0
    %1808 = vmatprep.subr.mxu0 0.0
    %1809 = vmatpush1.msra.mxu0 0.0
    %1810 = vmatprep.subr.mxu0 0.0
    %1811 = vmatpush1.msra.mxu0 0.0
    %1812 = vmatprep.subr.mxu0 0.0
    %1813 = vmatpush1.msra.mxu0 0.0
    %1814 = vmatprep.subr.mxu0 0.0
    %1815 = vmatpush1.msra.mxu0 0.0
    %1816 = vmatprep.subr.mxu0 0.0
    %1817 = vmatpush1.msra.mxu0 0.0
    %1818 = vmatprep.subr.mxu0 0.0
    %1819 = vmatpush1.msra.mxu0 0.0
    %1820 = vmatprep.subr.mxu0 0.0
    %1821 = vmatpush1.msra.mxu0 0.0
    %1822 = vmatprep.subr.mxu0 0.0
    %1823 = vmatpush1.msra.mxu0 0.0
    %1824 = vmatprep.subr.mxu0 0.0
    %1825 = vmatpush1.msra.mxu0 0.0
    %1826 = vmatprep.subr.mxu0 0.0
    %1827 = vmatpush1.msra.mxu0 0.0
    %1828 = vmatprep.subr.mxu0 0.0
    %1829 = vmatpush1.msra.mxu0 0.0
    %1830 = vmatprep.subr.mxu0 0.0
    %1831 = vmatpush1.msra.mxu0 0.0
    %1832 = vmatprep.subr.mxu0 0.0
    %1833 = vmatpush1.msra.mxu0 0.0
    %1834 = vmatprep.subr.mxu0 0.0
    %1835 = vmatpush1.msra.mxu0 0.0
    %1836 = vmatprep.subr.mxu0 0.0
    %1837 = vmatpush1.msra.mxu0 %v1801
    %1838 = vmatprep.subr.mxu0 0.0
    %1839 = vmatpush2.msra.mxu0 0.0
    %1840 = vmatprep.subr.mxu0 0.0
    %1841 = vmatpush2.msra.mxu0 0.0
    %1842 = vmatprep.subr.mxu0 0.0
    %1843 = vmatpush2.msra.mxu0 0.0
    %1844 = vmatprep.subr.mxu0 0.0
    %1845 = vmatpush2.msra.mxu0 0.0
    %1846 = vmatprep.subr.mxu0 0.0
    %1847 = vmatpush2.msra.mxu0 0.0
    %1848 = vmatprep.subr.mxu0 0.0
    %1849 = vmatpush2.msra.mxu0 0.0
    %1850 = vmatprep.subr.mxu0 0.0
    %1851 = vmatpush2.msra.mxu0 0.0
    %1852 = vmatprep.subr.mxu0 0.0
    %1853 = vmatpush2.msra.mxu0 0.0
    %1854 = vmatprep.subr.mxu0 0.0
    %1855 = vmatpush2.msra.mxu0 0.0
    %1856 = vmatprep.subr.mxu0 0.0
    %1857 = vmatpush2.msra.mxu0 0.0
    %1858 = vmatprep.subr.mxu0 0.0
    %1859 = vmatpush2.msra.mxu0 0.0
    %1860 = vmatprep.subr.mxu0 0.0
    %1861 = vmatpush2.msra.mxu0 0.0
    %1862 = vmatprep.subr.mxu0 0.0
    %1863 = vmatpush2.msra.mxu0 0.0
    %1864 = vmatprep.subr.mxu0 0.0
    %1865 = vmatpush2.msra.mxu0 0.0
    %1866 = vmatprep.subr.mxu0 0.0
    %1867 = vmatpush2.msra.mxu0 0.0
    %1868 = vmatprep.subr.mxu0 0.0
    %1869 = vmatpush2.msra.mxu0 0.0
    %1870 = vmatprep.mubr.f32.mxu0 0.0
    %1871 = vmatmul.mubr.f32.gmra.mxu0 %v1804
    %v1872 = vpop.f32.mrf.mxu0
    %v1873 = vadd.f32 0.0, %v1872
    %v1874 = vpop.f32.mrf.mxu0
    %1875 = vdwg.mxu0
    %1876 = vrot.lane.b32.xlu0 %v386, 104
    %v1877 = vpop.permute.xlu0 %1876
    %v1880 = vsel %vm389, %v1799, 0
    %1882 = vmatprep.subr.mxu0 0.0
    %1883 = vmatpush1.msra.mxu0 0.0
    %1884 = vmatprep.subr.mxu0 0.0
    %1885 = vmatpush1.msra.mxu0 0.0
    %1886 = vmatprep.subr.mxu0 0.0
    %1887 = vmatpush1.msra.mxu0 0.0
    %1888 = vmatprep.subr.mxu0 0.0
    %1889 = vmatpush1.msra.mxu0 0.0
    %1890 = vmatprep.subr.mxu0 0.0
    %1891 = vmatpush1.msra.mxu0 0.0
    %1892 = vmatprep.subr.mxu0 0.0
    %1893 = vmatpush1.msra.mxu0 0.0
    %1894 = vmatprep.subr.mxu0 0.0
    %1895 = vmatpush1.msra.mxu0 0.0
    %1896 = vmatprep.subr.mxu0 0.0
    %1897 = vmatpush1.msra.mxu0 0.0
    %1898 = vmatprep.subr.mxu0 0.0
    %1899 = vmatpush1.msra.mxu0 0.0
    %1900 = vmatprep.subr.mxu0 0.0
    %1901 = vmatpush1.msra.mxu0 0.0
    %1902 = vmatprep.subr.mxu0 0.0
    %1903 = vmatpush1.msra.mxu0 0.0
    %1904 = vmatprep.subr.mxu0 0.0
    %1905 = vmatpush1.msra.mxu0 0.0
    %1906 = vmatprep.subr.mxu0 0.0
    %1907 = vmatpush1.msra.mxu0 0.0
    %1908 = vmatprep.subr.mxu0 0.0
    %1909 = vmatpush1.msra.mxu0 0.0
    %1910 = vmatprep.subr.mxu0 0.0
    %1911 = vmatpush1.msra.mxu0 0.0
    %1912 = vmatprep.subr.mxu0 0.0
    %1913 = vmatpush1.msra.mxu0 %v1877
    %1914 = vmatprep.subr.mxu0 0.0
    %1915 = vmatpush2.msra.mxu0 0.0
    %1916 = vmatprep.subr.mxu0 0.0
    %1917 = vmatpush2.msra.mxu0 0.0
    %1918 = vmatprep.subr.mxu0 0.0
    %1919 = vmatpush2.msra.mxu0 0.0
    %1920 = vmatprep.subr.mxu0 0.0
    %1921 = vmatpush2.msra.mxu0 0.0
    %1922 = vmatprep.subr.mxu0 0.0
    %1923 = vmatpush2.msra.mxu0 0.0
    %1924 = vmatprep.subr.mxu0 0.0
    %1925 = vmatpush2.msra.mxu0 0.0
    %1926 = vmatprep.subr.mxu0 0.0
    %1927 = vmatpush2.msra.mxu0 0.0
    %1928 = vmatprep.subr.mxu0 0.0
    %1929 = vmatpush2.msra.mxu0 0.0
    %1930 = vmatprep.subr.mxu0 0.0
    %1931 = vmatpush2.msra.mxu0 0.0
    %1932 = vmatprep.subr.mxu0 0.0
    %1933 = vmatpush2.msra.mxu0 0.0
    %1934 = vmatprep.subr.mxu0 0.0
    %1935 = vmatpush2.msra.mxu0 0.0
    %1936 = vmatprep.subr.mxu0 0.0
    %1937 = vmatpush2.msra.mxu0 0.0
    %1938 = vmatprep.subr.mxu0 0.0
    %1939 = vmatpush2.msra.mxu0 0.0
    %1940 = vmatprep.subr.mxu0 0.0
    %1941 = vmatpush2.msra.mxu0 0.0
    %1942 = vmatprep.subr.mxu0 0.0
    %1943 = vmatpush2.msra.mxu0 0.0
    %1944 = vmatprep.subr.mxu0 0.0
    %1945 = vmatpush2.msra.mxu0 0.0
    %1946 = vmatprep.mubr.f32.mxu0 0.0
    %1947 = vmatmul.mubr.f32.gmra.mxu0 %v1880
    %v1948 = vpop.f32.mrf.mxu0
    %v1949 = vadd.f32 0.0, %v1948
    %v1950 = vpop.f32.mrf.mxu0
    %1951 = vdwg.mxu0
    %s1952 = scalar_lea.vmem %s9, 24
    %v1953 = vld [vmem:[%s1952] sm:$0xff]
    %v1955 = vsel %vm389, %v1873, 0
    %v1958 = vsel %vm389, %v1949, 0
    %1960 = vmatprep.subr.mxu0 0.0
    %1961 = vmatpush1.msra.mxu0 0.0
    %1962 = vmatprep.subr.mxu0 0.0
    %1963 = vmatpush1.msra.mxu0 0.0
    %1964 = vmatprep.subr.mxu0 0.0
    %1965 = vmatpush1.msra.mxu0 0.0
    %1966 = vmatprep.subr.mxu0 0.0
    %1967 = vmatpush1.msra.mxu0 0.0
    %1968 = vmatprep.subr.mxu0 0.0
    %1969 = vmatpush1.msra.mxu0 0.0
    %1970 = vmatprep.subr.mxu0 0.0
    %1971 = vmatpush1.msra.mxu0 0.0
    %1972 = vmatprep.subr.mxu0 0.0
    %1973 = vmatpush1.msra.mxu0 0.0
    %1974 = vmatprep.subr.mxu0 0.0
    %1975 = vmatpush1.msra.mxu0 0.0
    %1976 = vmatprep.subr.mxu0 0.0
    %1977 = vmatpush1.msra.mxu0 0.0
    %1978 = vmatprep.subr.mxu0 0.0
    %1979 = vmatpush1.msra.mxu0 0.0
    %1980 = vmatprep.subr.mxu0 0.0
    %1981 = vmatpush1.msra.mxu0 0.0
    %1982 = vmatprep.subr.mxu0 0.0
    %1983 = vmatpush1.msra.mxu0 0.0
    %1984 = vmatprep.subr.mxu0 0.0
    %1985 = vmatpush1.msra.mxu0 0.0
    %1986 = vmatprep.subr.mxu0 0.0
    %1987 = vmatpush1.msra.mxu0 0.0
    %1988 = vmatprep.subr.mxu0 0.0
    %1989 = vmatpush1.msra.mxu0 0.0
    %1990 = vmatprep.subr.mxu0 0.0
    %1991 = vmatpush1.msra.mxu0 %v1953
    %1992 = vmatprep.subr.mxu0 0.0
    %1993 = vmatpush2.msra.mxu0 0.0
    %1994 = vmatprep.subr.mxu0 0.0
    %1995 = vmatpush2.msra.mxu0 0.0
    %1996 = vmatprep.subr.mxu0 0.0
    %1997 = vmatpush2.msra.mxu0 0.0
    %1998 = vmatprep.subr.mxu0 0.0
    %1999 = vmatpush2.msra.mxu0 0.0
    %2000 = vmatprep.subr.mxu0 0.0
    %2001 = vmatpush2.msra.mxu0 0.0
    %2002 = vmatprep.subr.mxu0 0.0
    %2003 = vmatpush2.msra.mxu0 0.0
    %2004 = vmatprep.subr.mxu0 0.0
    %2005 = vmatpush2.msra.mxu0 0.0
    %2006 = vmatprep.subr.mxu0 0.0
    %2007 = vmatpush2.msra.mxu0 0.0
    %2008 = vmatprep.subr.mxu0 0.0
    %2009 = vmatpush2.msra.mxu0 0.0
    %2010 = vmatprep.subr.mxu0 0.0
    %2011 = vmatpush2.msra.mxu0 0.0
    %2012 = vmatprep.subr.mxu0 0.0
    %2013 = vmatpush2.msra.mxu0 0.0
    %2014 = vmatprep.subr.mxu0 0.0
    %2015 = vmatpush2.msra.mxu0 0.0
    %2016 = vmatprep.subr.mxu0 0.0
    %2017 = vmatpush2.msra.mxu0 0.0
    %2018 = vmatprep.subr.mxu0 0.0
    %2019 = vmatpush2.msra.mxu0 0.0
    %2020 = vmatprep.subr.mxu0 0.0
    %2021 = vmatpush2.msra.mxu0 0.0
    %2022 = vmatprep.subr.mxu0 0.0
    %2023 = vmatpush2.msra.mxu0 0.0
    %2024 = vmatprep.mubr.f32.mxu0 0.0
    %2025 = vmatmul.mubr.f32.gmra.mxu0 %v1955
    %v2026 = vpop.f32.mrf.mxu0
    %v2027 = vadd.f32 0.0, %v2026
    %v2028 = vpop.f32.mrf.mxu0
    %2029 = vmatprep.mubr.f32.mxu0 0.0
    %2030 = vmatmul.mubr.f32.gmra.mxu0 %v1958
    %v2031 = vpop.f32.mrf.mxu0
    %v2032 = vadd.f32 0.0, %v2031
    %v2033 = vpop.f32.mrf.mxu0
    %2034 = vdwg.mxu0
    %v2035 = vadd.f32 %v1620, %v2027
    %v2036 = vadd.f32 %v1621, %v2032
    %v2037 = vld [vmem:[%s10] sm:$0x1]
    %v2039 = vlaneseq
    %v2040 = vshrl.u32 %v2039, 7
    %v2041 = vsub.s32 0, %v2040
    %v2042 = vrot.slane %v2037, %v2041
    %v2044 = vadd.f32 %v2035, %v2042
    %v2045 = vadd.f32 %v2036, %v2042
    %v2046 = vld [vmem:[%s11] sm:$0x1]
    %v2047 = vld [vmem:[%s12] sm:$0x1]
    %v2048 = vsel %vm121, %v2044, 0.0
    %2049 = vadd.xlane.f32.xlu0 %v2048
    %v2050 = vpop.xlane.xlu0 %2049
    %v2051 = vsel %vm121, %v2045, 0.0
    %2052 = vadd.xlane.f32.xlu0 %v2051
    %v2053 = vpop.xlane.xlu0 %2052
    %v2054 = vrcp.pop 32.0
    %v2055 = vmul.f32 %v2050, %v2054
    %v2056 = vmul.f32 %v2053, %v2054
    %v2057 = vsub.f32 %v2044, %v2055
    %v2058 = vsub.f32 %v2045, %v2056
    %v2059 = vmul.f32 %v2057, %v2057
    %v2060 = vmul.f32 %v2058, %v2058
    %v2061 = vsel %vm121, %v2059, 0.0
    %2062 = vadd.xlane.f32.xlu0 %v2061
    %v2063 = vpop.xlane.xlu0 %2062
    %v2064 = vsel %vm121, %v2060, 0.0
    %2065 = vadd.xlane.f32.xlu0 %v2064
    %v2066 = vpop.xlane.xlu0 %2065
    %v2067 = vmul.f32 %v2063, %v2054
    %v2068 = vmul.f32 %v2066, %v2054
    %v2069 = vadd.f32 %v2067, 1e-05
    %v2070 = vadd.f32 %v2068, 1e-05
    %v2071 = vrsqrt.pop %v2069
    %v2072 = vrsqrt.pop %v2070
    %v2073 = vmul.f32 %v2057, %v2071
    %v2074 = vmul.f32 %v2058, %v2072
    %v2076 = vlaneseq
    %v2077 = vshrl.u32 %v2076, 7
    %v2078 = vsub.s32 0, %v2077
    %v2079 = vrot.slane %v2046, %v2078
    %v2081 = vmul.f32 %v2073, %v2079
    %v2082 = vmul.f32 %v2074, %v2079
    %v2084 = vlaneseq
    %v2085 = vshrl.u32 %v2084, 7
    %v2086 = vsub.s32 0, %v2085
    %v2087 = vrot.slane %v2047, %v2086
    %v2089 = vadd.f32 %v2081, %v2087
    %v2090 = vadd.f32 %v2082, %v2087
    %v2091 = vld [vmem:[%s13] sm:$0xff]
    %v2092 = vld [vmem:[%s13 + $0x8] sm:$0xff]
    %v2093 = vld [vmem:[%s13 + $0x10] sm:$0xff]
    %v2094 = vld [vmem:[%s13 + $0x18] sm:$0xff]
    %v2095 = vld [vmem:[%s14] sm:$0x1]
    %v2097 = vlaneseq
    %v2098 = vshrl.u32 %v2097, 7
    %v2099 = vsub.s32 0, %v2098
    %v2100 = vrot.slane %v2095, %v2099
    %v2103 = vsel %vm121, %v2089, 0
    %v2106 = vsel %vm121, %v2090, 0
    %2108 = vmatprep.subr.mxu0 0.0
    %2109 = vmatpush1.msra.mxu0 0.0
    %2110 = vmatprep.subr.mxu0 0.0
    %2111 = vmatpush1.msra.mxu0 0.0
    %2112 = vmatprep.subr.mxu0 0.0
    %2113 = vmatpush1.msra.mxu0 0.0
    %2114 = vmatprep.subr.mxu0 0.0
    %2115 = vmatpush1.msra.mxu0 0.0
    %2116 = vmatprep.subr.mxu0 0.0
    %2117 = vmatpush1.msra.mxu0 0.0
    %2118 = vmatprep.subr.mxu0 0.0
    %2119 = vmatpush1.msra.mxu0 0.0
    %2120 = vmatprep.subr.mxu0 0.0
    %2121 = vmatpush1.msra.mxu0 0.0
    %2122 = vmatprep.subr.mxu0 0.0
    %2123 = vmatpush1.msra.mxu0 0.0
    %2124 = vmatprep.subr.mxu0 0.0
    %2125 = vmatpush1.msra.mxu0 0.0
    %2126 = vmatprep.subr.mxu0 0.0
    %2127 = vmatpush1.msra.mxu0 0.0
    %2128 = vmatprep.subr.mxu0 0.0
    %2129 = vmatpush1.msra.mxu0 0.0
    %2130 = vmatprep.subr.mxu0 0.0
    %2131 = vmatpush1.msra.mxu0 0.0
    %2132 = vmatprep.subr.mxu0 0.0
    %2133 = vmatpush1.msra.mxu0 %v2094
    %2134 = vmatprep.subr.mxu0 0.0
    %2135 = vmatpush1.msra.mxu0 %v2093
    %2136 = vmatprep.subr.mxu0 0.0
    %2137 = vmatpush1.msra.mxu0 %v2092
    %2138 = vmatprep.subr.mxu0 0.0
    %2139 = vmatpush1.msra.mxu0 %v2091
    %2140 = vmatprep.subr.mxu0 0.0
    %2141 = vmatpush2.msra.mxu0 0.0
    %2142 = vmatprep.subr.mxu0 0.0
    %2143 = vmatpush2.msra.mxu0 0.0
    %2144 = vmatprep.subr.mxu0 0.0
    %2145 = vmatpush2.msra.mxu0 0.0
    %2146 = vmatprep.subr.mxu0 0.0
    %2147 = vmatpush2.msra.mxu0 0.0
    %2148 = vmatprep.subr.mxu0 0.0
    %2149 = vmatpush2.msra.mxu0 0.0
    %2150 = vmatprep.subr.mxu0 0.0
    %2151 = vmatpush2.msra.mxu0 0.0
    %2152 = vmatprep.subr.mxu0 0.0
    %2153 = vmatpush2.msra.mxu0 0.0
    %2154 = vmatprep.subr.mxu0 0.0
    %2155 = vmatpush2.msra.mxu0 0.0
    %2156 = vmatprep.subr.mxu0 0.0
    %2157 = vmatpush2.msra.mxu0 0.0
    %2158 = vmatprep.subr.mxu0 0.0
    %2159 = vmatpush2.msra.mxu0 0.0
    %2160 = vmatprep.subr.mxu0 0.0
    %2161 = vmatpush2.msra.mxu0 0.0
    %2162 = vmatprep.subr.mxu0 0.0
    %2163 = vmatpush2.msra.mxu0 0.0
    %2164 = vmatprep.subr.mxu0 0.0
    %2165 = vmatpush2.msra.mxu0 0.0
    %2166 = vmatprep.subr.mxu0 0.0
    %2167 = vmatpush2.msra.mxu0 0.0
    %2168 = vmatprep.subr.mxu0 0.0
    %2169 = vmatpush2.msra.mxu0 0.0
    %2170 = vmatprep.subr.mxu0 0.0
    %2171 = vmatpush2.msra.mxu0 0.0
    %2172 = vmatprep.mubr.f32.mxu0 0.0
    %2173 = vmatmul.mubr.f32.gmra.mxu0 %v2103
    %v2174 = vpop.f32.mrf.mxu0
    %v2175 = vadd.f32 %v2100, %v2174
    %v2176 = vpop.f32.mrf.mxu0
    %2177 = vmatprep.mubr.f32.mxu0 0.0
    %2178 = vmatmul.mubr.f32.gmra.mxu0 %v2106
    %v2179 = vpop.f32.mrf.mxu0
    %v2180 = vadd.f32 %v2100, %v2179
    %v2181 = vpop.f32.mrf.mxu0
    %2182 = vdwg.mxu0
    %v2183 = vmax.f32 %v2175, 0.0
    %v2184 = vmax.f32 %v2180, 0.0
    %v2185 = vld [vmem:[%s15] sm:$0xff]
    %v2186 = vld [vmem:[%s15 + $0x8] sm:$0xff]
    %v2187 = vld [vmem:[%s15 + $0x10] sm:$0xff]
    %v2188 = vld [vmem:[%s15 + $0x18] sm:$0xff]
    %v2189 = vld [vmem:[%s15 + $0x20] sm:$0xff]
    %v2190 = vld [vmem:[%s15 + $0x28] sm:$0xff]
    %v2191 = vld [vmem:[%s15 + $0x30] sm:$0xff]
    %v2192 = vld [vmem:[%s15 + $0x38] sm:$0xff]
    %v2193 = vld [vmem:[%s15 + $0x40] sm:$0xff]
    %v2194 = vld [vmem:[%s15 + $0x48] sm:$0xff]
    %v2195 = vld [vmem:[%s15 + $0x50] sm:$0xff]
    %v2196 = vld [vmem:[%s15 + $0x58] sm:$0xff]
    %v2197 = vld [vmem:[%s15 + $0x60] sm:$0xff]
    %v2198 = vld [vmem:[%s15 + $0x68] sm:$0xff]
    %v2199 = vld [vmem:[%s15 + $0x70] sm:$0xff]
    %v2200 = vld [vmem:[%s15 + $0x78] sm:$0xff]
    %v2201 = vld [vmem:[%s16] sm:$0x1]
    %v2203 = vlaneseq
    %v2204 = vshrl.u32 %v2203, 7
    %v2205 = vsub.s32 0, %v2204
    %v2206 = vrot.slane %v2201, %v2205
    %2208 = vmatprep.subr.mxu0 0.0
    %2209 = vmatpush1.msra.mxu0 %v2200
    %2210 = vmatprep.subr.mxu0 0.0
    %2211 = vmatpush1.msra.mxu0 %v2199
    %2212 = vmatprep.subr.mxu0 0.0
    %2213 = vmatpush1.msra.mxu0 %v2198
    %2214 = vmatprep.subr.mxu0 0.0
    %2215 = vmatpush1.msra.mxu0 %v2197
    %2216 = vmatprep.subr.mxu0 0.0
    %2217 = vmatpush1.msra.mxu0 %v2196
    %2218 = vmatprep.subr.mxu0 0.0
    %2219 = vmatpush1.msra.mxu0 %v2195
    %2220 = vmatprep.subr.mxu0 0.0
    %2221 = vmatpush1.msra.mxu0 %v2194
    %2222 = vmatprep.subr.mxu0 0.0
    %2223 = vmatpush1.msra.mxu0 %v2193
    %2224 = vmatprep.subr.mxu0 0.0
    %2225 = vmatpush1.msra.mxu0 %v2192
    %2226 = vmatprep.subr.mxu0 0.0
    %2227 = vmatpush1.msra.mxu0 %v2191
    %2228 = vmatprep.subr.mxu0 0.0
    %2229 = vmatpush1.msra.mxu0 %v2190
    %2230 = vmatprep.subr.mxu0 0.0
    %2231 = vmatpush1.msra.mxu0 %v2189
    %2232 = vmatprep.subr.mxu0 0.0
    %2233 = vmatpush1.msra.mxu0 %v2188
    %2234 = vmatprep.subr.mxu0 0.0
    %2235 = vmatpush1.msra.mxu0 %v2187
    %2236 = vmatprep.subr.mxu0 0.0
    %2237 = vmatpush1.msra.mxu0 %v2186
    %2238 = vmatprep.subr.mxu0 0.0
    %2239 = vmatpush1.msra.mxu0 %v2185
    %2240 = vmatprep.subr.mxu0 0.0
    %2241 = vmatpush2.msra.mxu0 0.0
    %2242 = vmatprep.subr.mxu0 0.0
    %2243 = vmatpush2.msra.mxu0 0.0
    %2244 = vmatprep.subr.mxu0 0.0
    %2245 = vmatpush2.msra.mxu0 0.0
    %2246 = vmatprep.subr.mxu0 0.0
    %2247 = vmatpush2.msra.mxu0 0.0
    %2248 = vmatprep.subr.mxu0 0.0
    %2249 = vmatpush2.msra.mxu0 0.0
    %2250 = vmatprep.subr.mxu0 0.0
    %2251 = vmatpush2.msra.mxu0 0.0
    %2252 = vmatprep.subr.mxu0 0.0
    %2253 = vmatpush2.msra.mxu0 0.0
    %2254 = vmatprep.subr.mxu0 0.0
    %2255 = vmatpush2.msra.mxu0 0.0
    %2256 = vmatprep.subr.mxu0 0.0
    %2257 = vmatpush2.msra.mxu0 0.0
    %2258 = vmatprep.subr.mxu0 0.0
    %2259 = vmatpush2.msra.mxu0 0.0
    %2260 = vmatprep.subr.mxu0 0.0
    %2261 = vmatpush2.msra.mxu0 0.0
    %2262 = vmatprep.subr.mxu0 0.0
    %2263 = vmatpush2.msra.mxu0 0.0
    %2264 = vmatprep.subr.mxu0 0.0
    %2265 = vmatpush2.msra.mxu0 0.0
    %2266 = vmatprep.subr.mxu0 0.0
    %2267 = vmatpush2.msra.mxu0 0.0
    %2268 = vmatprep.subr.mxu0 0.0
    %2269 = vmatpush2.msra.mxu0 0.0
    %2270 = vmatprep.subr.mxu0 0.0
    %2271 = vmatpush2.msra.mxu0 0.0
    %2272 = vmatprep.mubr.f32.mxu0 0.0
    %2273 = vmatmul.mubr.f32.gmra.mxu0 %v2183
    %v2274 = vpop.f32.mrf.mxu0
    %v2275 = vadd.f32 %v2206, %v2274
    %v2276 = vpop.f32.mrf.mxu0
    %2277 = vmatprep.mubr.f32.mxu0 0.0
    %2278 = vmatmul.mubr.f32.gmra.mxu0 %v2184
    %v2279 = vpop.f32.mrf.mxu0
    %v2280 = vadd.f32 %v2206, %v2279
    %v2281 = vpop.f32.mrf.mxu0
    %2282 = vdwg.mxu0
    %v2283 = vadd.f32 %v2275, %v2089
    %v2284 = vadd.f32 %v2280, %v2090
    %v2285 = vld [vmem:[%s17] sm:$0x1]
    %v2286 = vld [vmem:[%s18] sm:$0x1]
    %v2287 = vsel %vm121, %v2283, 0.0
    %2288 = vadd.xlane.f32.xlu0 %v2287
    %v2289 = vpop.xlane.xlu0 %2288
    %v2290 = vsel %vm121, %v2284, 0.0
    %2291 = vadd.xlane.f32.xlu0 %v2290
    %v2292 = vpop.xlane.xlu0 %2291
    %v2293 = vmul.f32 %v2289, %v2054
    %v2294 = vmul.f32 %v2292, %v2054
    %v2295 = vsub.f32 %v2283, %v2293
    %v2296 = vsub.f32 %v2284, %v2294
    %v2297 = vmul.f32 %v2295, %v2295
    %v2298 = vmul.f32 %v2296, %v2296
    %v2299 = vsel %vm121, %v2297, 0.0
    %2300 = vadd.xlane.f32.xlu0 %v2299
    %v2301 = vpop.xlane.xlu0 %2300
    %v2302 = vsel %vm121, %v2298, 0.0
    %2303 = vadd.xlane.f32.xlu0 %v2302
    %v2304 = vpop.xlane.xlu0 %2303
    %v2305 = vmul.f32 %v2301, %v2054
    %v2306 = vmul.f32 %v2304, %v2054
    %v2307 = vadd.f32 %v2305, 1e-05
    %v2308 = vadd.f32 %v2306, 1e-05
    %v2309 = vrsqrt.pop %v2307
    %v2310 = vrsqrt.pop %v2308
    %v2311 = vmul.f32 %v2295, %v2309
    %v2312 = vmul.f32 %v2296, %v2310
    %v2314 = vlaneseq
    %v2315 = vshrl.u32 %v2314, 7
    %v2316 = vsub.s32 0, %v2315
    %v2317 = vrot.slane %v2285, %v2316
    %v2319 = vmul.f32 %v2311, %v2317
    %v2320 = vmul.f32 %v2312, %v2317
    %v2322 = vlaneseq
    %v2323 = vshrl.u32 %v2322, 7
    %v2324 = vsub.s32 0, %v2323
    %v2325 = vrot.slane %v2286, %v2324
    %v2327 = vadd.f32 %v2319, %v2325
    %v2328 = vadd.f32 %v2320, %v2325
    %2329 = vst.msk [vmem:[#allocation8] sm:$0xff] %vm121, %v2327
    %2330 = vst.msk [vmem:[#allocation8 + $0x8] sm:$0xff] %vm121, %v2328
    // Predicated region
    $region90: #{tpu_custom_call.1} parent=1 // pred_check
      _
    $region91: #{tpu_custom_call.1} parent=1 // pred_check_branch
      %2332 = sbr.rel (0) target = $region93
    $region92: #{tpu_custom_call.1} parent=1 // pred_region
      %s2334 = ssub.s32 256, 256
      %2335 = vsyncadd [#allocation4], %s2334
      %s2336 = sshll.u32 [#allocation8], 4
      %s2337 = int_to_ptr.vmem [resolvable:$true] %s2336
      %2342 = dma.vmem_to_hbm [thread:$0]  %s2337, 256, %s19, [#allocation4], 128, 128, 8
    $region93: #{tpu_custom_call.1} parent=1 // pred_fallthru
      _
    // Predicated region
    $region94: #{tpu_custom_call.1} parent=1 // pred_check
      _
    $region95: #{tpu_custom_call.1} parent=1 // pred_check_branch
      %2344 = sbr.rel (0) target = $region97
    $region96: #{tpu_custom_call.1} parent=1 // pred_region
      %2345 = dma.done [#allocation4], 256
    $region97: #{tpu_custom_call.1} parent=1 // pred_fallthru
      _
    %2346 = vsyncpa [#allocation3], 1
    %2347 = vsyncpa [#allocation6], 1
    %2348 = vsyncpa [#allocation4], 1

</llo_original>
